<compile_context>
chip_gen: v7x
topology: tpu7x:2x2x1
jax: 0.10.0
libtpu: 0.0.40
codegen_flags: <defaults>
</compile_context>

<pallas_src>
import functools

import jax
import jax.numpy as jnp
from jax.experimental import pallas as pl
from jax.experimental.pallas import tpu as pltpu


def _cheb_conv_kernel(x_ref, chebkt_ref, theta_ref, o_ref, *, N, K, F_in, F_out, T):
    """One grid step = one batch element, all timesteps, all K Chebyshev orders.

    x_ref:      (1, N, F_in*T)   VMEM  graph signals, lanes = (f_in, t)
    chebkt_ref: (K*N, N)         VMEM  resident stacked T_k^T
    theta_ref:  (K*F_in*F_out,)  SMEM  resident flattened Theta (f32 scalars)
    o_ref:      (1, N, F_out*T)  VMEM  lane-dense output block, lanes = (f_out, t)
    """
    # Stage 1 (MXU): node mixing for all K orders and all timesteps in one matmul.
    #   r[k*N + n, fi*T + t] = sum_m T_k[m, n] * x[b, m, fi, t]
    r = jnp.dot(chebkt_ref[...], x_ref[0], preferred_element_type=jnp.float32)

    # Hoist the K*F_in static (N, T) tiles of r so each lane slice happens exactly
    # once and is then reused (in vregs) across all F_out outputs.
    r_tiles = [
        [r[k * N:(k + 1) * N, fi * T:(fi + 1) * T] for fi in range(F_in)]
        for k in range(K)
    ]

    # Stage 2 (VPU): Theta contraction (depth K*F_in) as scalar*tile FMAs -- the MXU
    # gains nothing at this depth.  Accumulate in vregs; the first term initializes
    # the accumulator (no zeros init).
    outs = []
    for fo in range(F_out):
        acc = r_tiles[0][0] * theta_ref[fo]            # k = 0, fi = 0 term
        for k in range(K):
            for fi in range(F_in):
                if k == 0 and fi == 0:
                    continue
                acc = acc + r_tiles[k][fi] * theta_ref[(k * F_in + fi) * F_out + fo]
        outs.append(acc)

    # Assemble the full (N, F_out*T) output row and issue one lane-dense store
    # (relu + downcast applied once on the assembled row).
    row = jnp.concatenate(outs, axis=-1)               # (N, F_out*T), f32
    o_ref[0] = jnp.maximum(row, 0.0).astype(o_ref.dtype)


def cheb_conv_pallas(x, cheb_polynomials, theta, *, compute_dtype=jnp.float32):
    """
    x:                 (B, N, F_in, T)  float32   (PyTorch layout)
    cheb_polynomials:  (K, N, N)        float32
    theta:             (K, F_in, F_out) float32
    compute_dtype:     dtype of the MXU operands (jnp.bfloat16 recommended on
                       v6e/v7x); accumulation and output stay float32.
    returns:           (B, N, F_out, T) float32
    """
    B, N, F_in, T = x.shape
    K = cheb_polynomials.shape[0]
    F_out = theta.shape[-1]

    # Free, layout-preserving view reshape (no transpose, no extra HBM round trip).
    x2 = x.reshape(B, N, F_in * T).astype(compute_dtype)
    # Stacked transposed basis: chebkt[(k, n), m] = T_k[m, n].  Parameter-sized; in a
    # real model this is a constant precomputed once.  For very large N it should be
    # row-tiled instead of fully resident (v7x has 64 MiB VMEM per core).
    chebkt = jnp.swapaxes(cheb_polynomials, 1, 2).reshape(K * N, N).astype(compute_dtype)
    # Theta scalars go to SMEM (flattened to 1-D to avoid SMEM 2-D padding).
    theta_flat = theta.reshape(K * F_in * F_out).astype(jnp.float32)

    kernel = functools.partial(
        _cheb_conv_kernel, N=N, K=K, F_in=F_in, F_out=F_out, T=T)

    out2 = pl.pallas_call(
        kernel,
        out_shape=jax.ShapeDtypeStruct((B, N, F_out * T), jnp.float32),
        grid_spec=pltpu.PrefetchScalarGridSpec(
            num_scalar_prefetch=0,
            grid=(B,),  # one batch element per step; K and T live inside the kernel
            in_specs=[
                # per-step x block: all vertices, all features, all timesteps
                pl.BlockSpec((1, N, F_in * T), lambda b: (b, 0, 0)),
                # constant index_map => DMA'd once, VMEM-resident across the grid
                pl.BlockSpec((K * N, N), lambda b: (0, 0)),
                # Theta: whole array in SMEM (scalar operands for the VPU FMAs)
                pl.BlockSpec(memory_space=pltpu.MemorySpace.SMEM),
            ],
            out_specs=pl.BlockSpec((1, N, F_out * T), lambda b: (b, 0, 0)),
        ),
        compiler_params=pltpu.CompilerParams(
            # single "parallel" batch axis -> shards across the 2 TensorCores on v7x;
            # no-op on v5e/v6e (single TC).
            dimension_semantics=("parallel",),
        ),
    )(x2, chebkt, theta_flat)

    # Free view reshape back to the PyTorch layout (B, N, F_out, T).
    return out2.reshape(B, N, F_out, T)


def cheb_conv_reference(x, cheb_polynomials, theta):
    """Pure-JAX reference matching the PyTorch forward exactly."""
    B, N, F_in, T = x.shape
    K = cheb_polynomials.shape[0]
    F_out = theta.shape[-1]
    outs = []
    for t in range(T):
        gs = x[:, :, :, t]                                        # (B, N, F_in)
        out = jnp.zeros((B, N, F_out), dtype=jnp.float32)
        for k in range(K):
            T_k = cheb_polynomials[k]                             # (N, N)
            aux = jnp.matmul(jnp.transpose(gs, (0, 2, 1)), T_k)   # (B, F_in, N)
            rhs = jnp.transpose(aux, (0, 2, 1))                   # (B, N, F_in)
            out = out + jnp.matmul(rhs, theta[k])                 # (B, N, F_out)
        outs.append(out[..., None])
    return jax.nn.relu(jnp.concatenate(outs, axis=-1))            # (B, N, F_out, T)


def make_cheb_polynomials(key, N, K):
    """Deterministically build K Chebyshev polynomials of a scaled Laplacian."""
    a = jax.random.uniform(key, (N, N), dtype=jnp.float32)
    adj = (a + a.T) * 0.5
    adj = adj - jnp.diag(jnp.diag(adj))
    deg = jnp.diag(jnp.sum(adj, axis=1))
    lap = deg - adj
    eigmax = jnp.max(jnp.linalg.eigvalsh(lap))
    L_tilde = (2.0 / eigmax) * lap - jnp.eye(N, dtype=jnp.float32)
    polys = [jnp.eye(N, dtype=jnp.float32), L_tilde]
    for _ in range(2, K):
        polys.append(2.0 * L_tilde @ polys[-1] - polys[-2])
    return jnp.stack(polys[:K], axis=0)                           # (K, N, N)


if __name__ == "__main__":
    # small shapes consistent with the module's forward
    B, N, F_in, F_out, T, K = 2, 16, 4, 8, 8, 3

    key = jax.random.PRNGKey(0)
    kx, kc, kth = jax.random.split(key, 3)

    x = jax.random.normal(kx, (B, N, F_in, T), dtype=jnp.float32)
    cheb_polys = make_cheb_polynomials(kc, N, K)                  # (K, N, N)
    theta = jax.random.normal(kth, (K, F_in, F_out), dtype=jnp.float32) * 0.1

    ref = cheb_conv_reference(x, cheb_polys, theta)

    # f32 path (tight check)
    out = jax.block_until_ready(cheb_conv_pallas(x, cheb_polys, theta))
    assert out.shape == (B, N, F_out, T), out.shape
    assert jnp.allclose(out, ref, atol=1e-4, rtol=1e-4), "f32 mismatch vs reference"

    # bf16 MXU-operand path (v6e/v7x recommendation); f32 accumulation, loose check.
    out_bf16 = jax.block_until_ready(
        cheb_conv_pallas(x, cheb_polys, theta, compute_dtype=jnp.bfloat16))
    assert out_bf16.shape == (B, N, F_out, T), out_bf16.shape
    assert jnp.allclose(out_bf16, ref, atol=5e-1, rtol=5e-2), "bf16 mismatch vs reference"

    print("KERNEL_OK")
</pallas_src>

<mosaic_0001>
module attributes {stable_mosaic.version = 11 : i64} {
  func.func @_cheb_conv_kernel(%arg0: i32, %arg1: memref<1x16x32xf32, #tpu.memory_space<vmem>>, %arg2: memref<48x16xf32, #tpu.memory_space<vmem>>, %arg3: memref<96xf32, #tpu.memory_space<smem>>, %arg4: memref<1x16x64xf32, #tpu.memory_space<vmem>>) attributes {dimension_semantics = [#tpu.dimension_semantics<parallel>], iteration_bounds = array<i64: 2>, scalar_prefetch = 0 : i64, scratch_operands = 0 : i64, tpu.core_type = #tpu.core_type<tc>, window_params = [{transform_indices = @transform_0, window_bounds = array<i64: 1, 16, 32>}, {pipeline_mode = #tpu.pipeline_mode<synchronous>, transform_indices = @transform_1, window_bounds = array<i64: 48, 16>}, {transform_indices = @transform_2, window_bounds = array<i64: 96>}, {transform_indices = @transform_3, window_bounds = array<i64: 1, 16, 64>}]} {
    %c0 = arith.constant 0 : index
    %c0_0 = arith.constant 0 : index
    %0 = vector.load %arg2[%c0, %c0_0] : memref<48x16xf32, #tpu.memory_space<vmem>>, vector<48x16xf32>
    %c0_1 = arith.constant 0 : index
    %c0_2 = arith.constant 0 : index
    %c0_3 = arith.constant 0 : index
    %1 = vector.load %arg1[%c0_1, %c0_2, %c0_3] : memref<1x16x32xf32, #tpu.memory_space<vmem>>, vector<1x16x32xf32>
    %2 = vector.shape_cast %1 : vector<1x16x32xf32> to vector<16x32xf32>
    %cst = arith.constant dense<0.000000e+00> : vector<48x32xf32>
    %3 = tpu.matmul %0, %2, %cst {dimension_numbers = #tpu.dot_dimension_numbers<[1], [0], [0], [1], [0, 0, 1, 1], [], []>} : vector<48x16xf32>, vector<16x32xf32>, vector<48x32xf32> -> vector<48x32xf32>
    %4 = vector.extract_strided_slice %3 {offsets = [0, 0], sizes = [16, 8], strides = [1, 1]} : vector<48x32xf32> to vector<16x8xf32>
    %5 = vector.extract_strided_slice %3 {offsets = [0, 8], sizes = [16, 8], strides = [1, 1]} : vector<48x32xf32> to vector<16x8xf32>
    %6 = vector.extract_strided_slice %3 {offsets = [0, 16], sizes = [16, 8], strides = [1, 1]} : vector<48x32xf32> to vector<16x8xf32>
    %7 = vector.extract_strided_slice %3 {offsets = [0, 24], sizes = [16, 8], strides = [1, 1]} : vector<48x32xf32> to vector<16x8xf32>
    %8 = vector.extract_strided_slice %3 {offsets = [16, 0], sizes = [16, 8], strides = [1, 1]} : vector<48x32xf32> to vector<16x8xf32>
    %9 = vector.extract_strided_slice %3 {offsets = [16, 8], sizes = [16, 8], strides = [1, 1]} : vector<48x32xf32> to vector<16x8xf32>
    %10 = vector.extract_strided_slice %3 {offsets = [16, 16], sizes = [16, 8], strides = [1, 1]} : vector<48x32xf32> to vector<16x8xf32>
    %11 = vector.extract_strided_slice %3 {offsets = [16, 24], sizes = [16, 8], strides = [1, 1]} : vector<48x32xf32> to vector<16x8xf32>
    %12 = vector.extract_strided_slice %3 {offsets = [32, 0], sizes = [16, 8], strides = [1, 1]} : vector<48x32xf32> to vector<16x8xf32>
    %13 = vector.extract_strided_slice %3 {offsets = [32, 8], sizes = [16, 8], strides = [1, 1]} : vector<48x32xf32> to vector<16x8xf32>
    %14 = vector.extract_strided_slice %3 {offsets = [32, 16], sizes = [16, 8], strides = [1, 1]} : vector<48x32xf32> to vector<16x8xf32>
    %15 = vector.extract_strided_slice %3 {offsets = [32, 24], sizes = [16, 8], strides = [1, 1]} : vector<48x32xf32> to vector<16x8xf32>
    %c0_4 = arith.constant 0 : index
    %16 = memref.load %arg3[%c0_4] : memref<96xf32, #tpu.memory_space<smem>>
    %17 = vector.broadcast %16 : f32 to vector<16x8xf32>
    %18 = arith.mulf %4, %17 : vector<16x8xf32>
    %c8 = arith.constant 8 : index
    %19 = memref.load %arg3[%c8] : memref<96xf32, #tpu.memory_space<smem>>
    %20 = vector.broadcast %19 : f32 to vector<16x8xf32>
    %21 = arith.mulf %5, %20 : vector<16x8xf32>
    %22 = arith.addf %18, %21 : vector<16x8xf32>
    %c16 = arith.constant 16 : index
    %23 = memref.load %arg3[%c16] : memref<96xf32, #tpu.memory_space<smem>>
    %24 = vector.broadcast %23 : f32 to vector<16x8xf32>
    %25 = arith.mulf %6, %24 : vector<16x8xf32>
    %26 = arith.addf %22, %25 : vector<16x8xf32>
    %c24 = arith.constant 24 : index
    %27 = memref.load %arg3[%c24] : memref<96xf32, #tpu.memory_space<smem>>
    %28 = vector.broadcast %27 : f32 to vector<16x8xf32>
    %29 = arith.mulf %7, %28 : vector<16x8xf32>
    %30 = arith.addf %26, %29 : vector<16x8xf32>
    %c32 = arith.constant 32 : index
    %31 = memref.load %arg3[%c32] : memref<96xf32, #tpu.memory_space<smem>>
    %32 = vector.broadcast %31 : f32 to vector<16x8xf32>
    %33 = arith.mulf %8, %32 : vector<16x8xf32>
    %34 = arith.addf %30, %33 : vector<16x8xf32>
    %c40 = arith.constant 40 : index
    %35 = memref.load %arg3[%c40] : memref<96xf32, #tpu.memory_space<smem>>
    %36 = vector.broadcast %35 : f32 to vector<16x8xf32>
    %37 = arith.mulf %9, %36 : vector<16x8xf32>
    %38 = arith.addf %34, %37 : vector<16x8xf32>
    %c48 = arith.constant 48 : index
    %39 = memref.load %arg3[%c48] : memref<96xf32, #tpu.memory_space<smem>>
    %40 = vector.broadcast %39 : f32 to vector<16x8xf32>
    %41 = arith.mulf %10, %40 : vector<16x8xf32>
    %42 = arith.addf %38, %41 : vector<16x8xf32>
    %c56 = arith.constant 56 : index
    %43 = memref.load %arg3[%c56] : memref<96xf32, #tpu.memory_space<smem>>
    %44 = vector.broadcast %43 : f32 to vector<16x8xf32>
    %45 = arith.mulf %11, %44 : vector<16x8xf32>
    %46 = arith.addf %42, %45 : vector<16x8xf32>
    %c64 = arith.constant 64 : index
    %47 = memref.load %arg3[%c64] : memref<96xf32, #tpu.memory_space<smem>>
    %48 = vector.broadcast %47 : f32 to vector<16x8xf32>
    %49 = arith.mulf %12, %48 : vector<16x8xf32>
    %50 = arith.addf %46, %49 : vector<16x8xf32>
    %c72 = arith.constant 72 : index
    %51 = memref.load %arg3[%c72] : memref<96xf32, #tpu.memory_space<smem>>
    %52 = vector.broadcast %51 : f32 to vector<16x8xf32>
    %53 = arith.mulf %13, %52 : vector<16x8xf32>
    %54 = arith.addf %50, %53 : vector<16x8xf32>
    %c80 = arith.constant 80 : index
    %55 = memref.load %arg3[%c80] : memref<96xf32, #tpu.memory_space<smem>>
    %56 = vector.broadcast %55 : f32 to vector<16x8xf32>
    %57 = arith.mulf %14, %56 : vector<16x8xf32>
    %58 = arith.addf %54, %57 : vector<16x8xf32>
    %c88 = arith.constant 88 : index
    %59 = memref.load %arg3[%c88] : memref<96xf32, #tpu.memory_space<smem>>
    %60 = vector.broadcast %59 : f32 to vector<16x8xf32>
    %61 = arith.mulf %15, %60 : vector<16x8xf32>
    %62 = arith.addf %58, %61 : vector<16x8xf32>
    %c1 = arith.constant 1 : index
    %63 = memref.load %arg3[%c1] : memref<96xf32, #tpu.memory_space<smem>>
    %64 = vector.broadcast %63 : f32 to vector<16x8xf32>
    %65 = arith.mulf %4, %64 : vector<16x8xf32>
    %c9 = arith.constant 9 : index
    %66 = memref.load %arg3[%c9] : memref<96xf32, #tpu.memory_space<smem>>
    %67 = vector.broadcast %66 : f32 to vector<16x8xf32>
    %68 = arith.mulf %5, %67 : vector<16x8xf32>
    %69 = arith.addf %65, %68 : vector<16x8xf32>
    %c17 = arith.constant 17 : index
    %70 = memref.load %arg3[%c17] : memref<96xf32, #tpu.memory_space<smem>>
    %71 = vector.broadcast %70 : f32 to vector<16x8xf32>
    %72 = arith.mulf %6, %71 : vector<16x8xf32>
    %73 = arith.addf %69, %72 : vector<16x8xf32>
    %c25 = arith.constant 25 : index
    %74 = memref.load %arg3[%c25] : memref<96xf32, #tpu.memory_space<smem>>
    %75 = vector.broadcast %74 : f32 to vector<16x8xf32>
    %76 = arith.mulf %7, %75 : vector<16x8xf32>
    %77 = arith.addf %73, %76 : vector<16x8xf32>
    %c33 = arith.constant 33 : index
    %78 = memref.load %arg3[%c33] : memref<96xf32, #tpu.memory_space<smem>>
    %79 = vector.broadcast %78 : f32 to vector<16x8xf32>
    %80 = arith.mulf %8, %79 : vector<16x8xf32>
    %81 = arith.addf %77, %80 : vector<16x8xf32>
    %c41 = arith.constant 41 : index
    %82 = memref.load %arg3[%c41] : memref<96xf32, #tpu.memory_space<smem>>
    %83 = vector.broadcast %82 : f32 to vector<16x8xf32>
    %84 = arith.mulf %9, %83 : vector<16x8xf32>
    %85 = arith.addf %81, %84 : vector<16x8xf32>
    %c49 = arith.constant 49 : index
    %86 = memref.load %arg3[%c49] : memref<96xf32, #tpu.memory_space<smem>>
    %87 = vector.broadcast %86 : f32 to vector<16x8xf32>
    %88 = arith.mulf %10, %87 : vector<16x8xf32>
    %89 = arith.addf %85, %88 : vector<16x8xf32>
    %c57 = arith.constant 57 : index
    %90 = memref.load %arg3[%c57] : memref<96xf32, #tpu.memory_space<smem>>
    %91 = vector.broadcast %90 : f32 to vector<16x8xf32>
    %92 = arith.mulf %11, %91 : vector<16x8xf32>
    %93 = arith.addf %89, %92 : vector<16x8xf32>
    %c65 = arith.constant 65 : index
    %94 = memref.load %arg3[%c65] : memref<96xf32, #tpu.memory_space<smem>>
    %95 = vector.broadcast %94 : f32 to vector<16x8xf32>
    %96 = arith.mulf %12, %95 : vector<16x8xf32>
    %97 = arith.addf %93, %96 : vector<16x8xf32>
    %c73 = arith.constant 73 : index
    %98 = memref.load %arg3[%c73] : memref<96xf32, #tpu.memory_space<smem>>
    %99 = vector.broadcast %98 : f32 to vector<16x8xf32>
    %100 = arith.mulf %13, %99 : vector<16x8xf32>
    %101 = arith.addf %97, %100 : vector<16x8xf32>
    %c81 = arith.constant 81 : index
    %102 = memref.load %arg3[%c81] : memref<96xf32, #tpu.memory_space<smem>>
    %103 = vector.broadcast %102 : f32 to vector<16x8xf32>
    %104 = arith.mulf %14, %103 : vector<16x8xf32>
    %105 = arith.addf %101, %104 : vector<16x8xf32>
    %c89 = arith.constant 89 : index
    %106 = memref.load %arg3[%c89] : memref<96xf32, #tpu.memory_space<smem>>
    %107 = vector.broadcast %106 : f32 to vector<16x8xf32>
    %108 = arith.mulf %15, %107 : vector<16x8xf32>
    %109 = arith.addf %105, %108 : vector<16x8xf32>
    %c2 = arith.constant 2 : index
    %110 = memref.load %arg3[%c2] : memref<96xf32, #tpu.memory_space<smem>>
    %111 = vector.broadcast %110 : f32 to vector<16x8xf32>
    %112 = arith.mulf %4, %111 : vector<16x8xf32>
    %c10 = arith.constant 10 : index
    %113 = memref.load %arg3[%c10] : memref<96xf32, #tpu.memory_space<smem>>
    %114 = vector.broadcast %113 : f32 to vector<16x8xf32>
    %115 = arith.mulf %5, %114 : vector<16x8xf32>
    %116 = arith.addf %112, %115 : vector<16x8xf32>
    %c18 = arith.constant 18 : index
    %117 = memref.load %arg3[%c18] : memref<96xf32, #tpu.memory_space<smem>>
    %118 = vector.broadcast %117 : f32 to vector<16x8xf32>
    %119 = arith.mulf %6, %118 : vector<16x8xf32>
    %120 = arith.addf %116, %119 : vector<16x8xf32>
    %c26 = arith.constant 26 : index
    %121 = memref.load %arg3[%c26] : memref<96xf32, #tpu.memory_space<smem>>
    %122 = vector.broadcast %121 : f32 to vector<16x8xf32>
    %123 = arith.mulf %7, %122 : vector<16x8xf32>
    %124 = arith.addf %120, %123 : vector<16x8xf32>
    %c34 = arith.constant 34 : index
    %125 = memref.load %arg3[%c34] : memref<96xf32, #tpu.memory_space<smem>>
    %126 = vector.broadcast %125 : f32 to vector<16x8xf32>
    %127 = arith.mulf %8, %126 : vector<16x8xf32>
    %128 = arith.addf %124, %127 : vector<16x8xf32>
    %c42 = arith.constant 42 : index
    %129 = memref.load %arg3[%c42] : memref<96xf32, #tpu.memory_space<smem>>
    %130 = vector.broadcast %129 : f32 to vector<16x8xf32>
    %131 = arith.mulf %9, %130 : vector<16x8xf32>
    %132 = arith.addf %128, %131 : vector<16x8xf32>
    %c50 = arith.constant 50 : index
    %133 = memref.load %arg3[%c50] : memref<96xf32, #tpu.memory_space<smem>>
    %134 = vector.broadcast %133 : f32 to vector<16x8xf32>
    %135 = arith.mulf %10, %134 : vector<16x8xf32>
    %136 = arith.addf %132, %135 : vector<16x8xf32>
    %c58 = arith.constant 58 : index
    %137 = memref.load %arg3[%c58] : memref<96xf32, #tpu.memory_space<smem>>
    %138 = vector.broadcast %137 : f32 to vector<16x8xf32>
    %139 = arith.mulf %11, %138 : vector<16x8xf32>
    %140 = arith.addf %136, %139 : vector<16x8xf32>
    %c66 = arith.constant 66 : index
    %141 = memref.load %arg3[%c66] : memref<96xf32, #tpu.memory_space<smem>>
    %142 = vector.broadcast %141 : f32 to vector<16x8xf32>
    %143 = arith.mulf %12, %142 : vector<16x8xf32>
    %144 = arith.addf %140, %143 : vector<16x8xf32>
    %c74 = arith.constant 74 : index
    %145 = memref.load %arg3[%c74] : memref<96xf32, #tpu.memory_space<smem>>
    %146 = vector.broadcast %145 : f32 to vector<16x8xf32>
    %147 = arith.mulf %13, %146 : vector<16x8xf32>
    %148 = arith.addf %144, %147 : vector<16x8xf32>
    %c82 = arith.constant 82 : index
    %149 = memref.load %arg3[%c82] : memref<96xf32, #tpu.memory_space<smem>>
    %150 = vector.broadcast %149 : f32 to vector<16x8xf32>
    %151 = arith.mulf %14, %150 : vector<16x8xf32>
    %152 = arith.addf %148, %151 : vector<16x8xf32>
    %c90 = arith.constant 90 : index
    %153 = memref.load %arg3[%c90] : memref<96xf32, #tpu.memory_space<smem>>
    %154 = vector.broadcast %153 : f32 to vector<16x8xf32>
    %155 = arith.mulf %15, %154 : vector<16x8xf32>
    %156 = arith.addf %152, %155 : vector<16x8xf32>
    %c3 = arith.constant 3 : index
    %157 = memref.load %arg3[%c3] : memref<96xf32, #tpu.memory_space<smem>>
    %158 = vector.broadcast %157 : f32 to vector<16x8xf32>
    %159 = arith.mulf %4, %158 : vector<16x8xf32>
    %c11 = arith.constant 11 : index
    %160 = memref.load %arg3[%c11] : memref<96xf32, #tpu.memory_space<smem>>
    %161 = vector.broadcast %160 : f32 to vector<16x8xf32>
    %162 = arith.mulf %5, %161 : vector<16x8xf32>
    %163 = arith.addf %159, %162 : vector<16x8xf32>
    %c19 = arith.constant 19 : index
    %164 = memref.load %arg3[%c19] : memref<96xf32, #tpu.memory_space<smem>>
    %165 = vector.broadcast %164 : f32 to vector<16x8xf32>
    %166 = arith.mulf %6, %165 : vector<16x8xf32>
    %167 = arith.addf %163, %166 : vector<16x8xf32>
    %c27 = arith.constant 27 : index
    %168 = memref.load %arg3[%c27] : memref<96xf32, #tpu.memory_space<smem>>
    %169 = vector.broadcast %168 : f32 to vector<16x8xf32>
    %170 = arith.mulf %7, %169 : vector<16x8xf32>
    %171 = arith.addf %167, %170 : vector<16x8xf32>
    %c35 = arith.constant 35 : index
    %172 = memref.load %arg3[%c35] : memref<96xf32, #tpu.memory_space<smem>>
    %173 = vector.broadcast %172 : f32 to vector<16x8xf32>
    %174 = arith.mulf %8, %173 : vector<16x8xf32>
    %175 = arith.addf %171, %174 : vector<16x8xf32>
    %c43 = arith.constant 43 : index
    %176 = memref.load %arg3[%c43] : memref<96xf32, #tpu.memory_space<smem>>
    %177 = vector.broadcast %176 : f32 to vector<16x8xf32>
    %178 = arith.mulf %9, %177 : vector<16x8xf32>
    %179 = arith.addf %175, %178 : vector<16x8xf32>
    %c51 = arith.constant 51 : index
    %180 = memref.load %arg3[%c51] : memref<96xf32, #tpu.memory_space<smem>>
    %181 = vector.broadcast %180 : f32 to vector<16x8xf32>
    %182 = arith.mulf %10, %181 : vector<16x8xf32>
    %183 = arith.addf %179, %182 : vector<16x8xf32>
    %c59 = arith.constant 59 : index
    %184 = memref.load %arg3[%c59] : memref<96xf32, #tpu.memory_space<smem>>
    %185 = vector.broadcast %184 : f32 to vector<16x8xf32>
    %186 = arith.mulf %11, %185 : vector<16x8xf32>
    %187 = arith.addf %183, %186 : vector<16x8xf32>
    %c67 = arith.constant 67 : index
    %188 = memref.load %arg3[%c67] : memref<96xf32, #tpu.memory_space<smem>>
    %189 = vector.broadcast %188 : f32 to vector<16x8xf32>
    %190 = arith.mulf %12, %189 : vector<16x8xf32>
    %191 = arith.addf %187, %190 : vector<16x8xf32>
    %c75 = arith.constant 75 : index
    %192 = memref.load %arg3[%c75] : memref<96xf32, #tpu.memory_space<smem>>
    %193 = vector.broadcast %192 : f32 to vector<16x8xf32>
    %194 = arith.mulf %13, %193 : vector<16x8xf32>
    %195 = arith.addf %191, %194 : vector<16x8xf32>
    %c83 = arith.constant 83 : index
    %196 = memref.load %arg3[%c83] : memref<96xf32, #tpu.memory_space<smem>>
    %197 = vector.broadcast %196 : f32 to vector<16x8xf32>
    %198 = arith.mulf %14, %197 : vector<16x8xf32>
    %199 = arith.addf %195, %198 : vector<16x8xf32>
    %c91 = arith.constant 91 : index
    %200 = memref.load %arg3[%c91] : memref<96xf32, #tpu.memory_space<smem>>
    %201 = vector.broadcast %200 : f32 to vector<16x8xf32>
    %202 = arith.mulf %15, %201 : vector<16x8xf32>
    %203 = arith.addf %199, %202 : vector<16x8xf32>
    %c4 = arith.constant 4 : index
    %204 = memref.load %arg3[%c4] : memref<96xf32, #tpu.memory_space<smem>>
    %205 = vector.broadcast %204 : f32 to vector<16x8xf32>
    %206 = arith.mulf %4, %205 : vector<16x8xf32>
    %c12 = arith.constant 12 : index
    %207 = memref.load %arg3[%c12] : memref<96xf32, #tpu.memory_space<smem>>
    %208 = vector.broadcast %207 : f32 to vector<16x8xf32>
    %209 = arith.mulf %5, %208 : vector<16x8xf32>
    %210 = arith.addf %206, %209 : vector<16x8xf32>
    %c20 = arith.constant 20 : index
    %211 = memref.load %arg3[%c20] : memref<96xf32, #tpu.memory_space<smem>>
    %212 = vector.broadcast %211 : f32 to vector<16x8xf32>
    %213 = arith.mulf %6, %212 : vector<16x8xf32>
    %214 = arith.addf %210, %213 : vector<16x8xf32>
    %c28 = arith.constant 28 : index
    %215 = memref.load %arg3[%c28] : memref<96xf32, #tpu.memory_space<smem>>
    %216 = vector.broadcast %215 : f32 to vector<16x8xf32>
    %217 = arith.mulf %7, %216 : vector<16x8xf32>
    %218 = arith.addf %214, %217 : vector<16x8xf32>
    %c36 = arith.constant 36 : index
    %219 = memref.load %arg3[%c36] : memref<96xf32, #tpu.memory_space<smem>>
    %220 = vector.broadcast %219 : f32 to vector<16x8xf32>
    %221 = arith.mulf %8, %220 : vector<16x8xf32>
    %222 = arith.addf %218, %221 : vector<16x8xf32>
    %c44 = arith.constant 44 : index
    %223 = memref.load %arg3[%c44] : memref<96xf32, #tpu.memory_space<smem>>
    %224 = vector.broadcast %223 : f32 to vector<16x8xf32>
    %225 = arith.mulf %9, %224 : vector<16x8xf32>
    %226 = arith.addf %222, %225 : vector<16x8xf32>
    %c52 = arith.constant 52 : index
    %227 = memref.load %arg3[%c52] : memref<96xf32, #tpu.memory_space<smem>>
    %228 = vector.broadcast %227 : f32 to vector<16x8xf32>
    %229 = arith.mulf %10, %228 : vector<16x8xf32>
    %230 = arith.addf %226, %229 : vector<16x8xf32>
    %c60 = arith.constant 60 : index
    %231 = memref.load %arg3[%c60] : memref<96xf32, #tpu.memory_space<smem>>
    %232 = vector.broadcast %231 : f32 to vector<16x8xf32>
    %233 = arith.mulf %11, %232 : vector<16x8xf32>
    %234 = arith.addf %230, %233 : vector<16x8xf32>
    %c68 = arith.constant 68 : index
    %235 = memref.load %arg3[%c68] : memref<96xf32, #tpu.memory_space<smem>>
    %236 = vector.broadcast %235 : f32 to vector<16x8xf32>
    %237 = arith.mulf %12, %236 : vector<16x8xf32>
    %238 = arith.addf %234, %237 : vector<16x8xf32>
    %c76 = arith.constant 76 : index
    %239 = memref.load %arg3[%c76] : memref<96xf32, #tpu.memory_space<smem>>
    %240 = vector.broadcast %239 : f32 to vector<16x8xf32>
    %241 = arith.mulf %13, %240 : vector<16x8xf32>
    %242 = arith.addf %238, %241 : vector<16x8xf32>
    %c84 = arith.constant 84 : index
    %243 = memref.load %arg3[%c84] : memref<96xf32, #tpu.memory_space<smem>>
    %244 = vector.broadcast %243 : f32 to vector<16x8xf32>
    %245 = arith.mulf %14, %244 : vector<16x8xf32>
    %246 = arith.addf %242, %245 : vector<16x8xf32>
    %c92 = arith.constant 92 : index
    %247 = memref.load %arg3[%c92] : memref<96xf32, #tpu.memory_space<smem>>
    %248 = vector.broadcast %247 : f32 to vector<16x8xf32>
    %249 = arith.mulf %15, %248 : vector<16x8xf32>
    %250 = arith.addf %246, %249 : vector<16x8xf32>
    %c5 = arith.constant 5 : index
    %251 = memref.load %arg3[%c5] : memref<96xf32, #tpu.memory_space<smem>>
    %252 = vector.broadcast %251 : f32 to vector<16x8xf32>
    %253 = arith.mulf %4, %252 : vector<16x8xf32>
    %c13 = arith.constant 13 : index
    %254 = memref.load %arg3[%c13] : memref<96xf32, #tpu.memory_space<smem>>
    %255 = vector.broadcast %254 : f32 to vector<16x8xf32>
    %256 = arith.mulf %5, %255 : vector<16x8xf32>
    %257 = arith.addf %253, %256 : vector<16x8xf32>
    %c21 = arith.constant 21 : index
    %258 = memref.load %arg3[%c21] : memref<96xf32, #tpu.memory_space<smem>>
    %259 = vector.broadcast %258 : f32 to vector<16x8xf32>
    %260 = arith.mulf %6, %259 : vector<16x8xf32>
    %261 = arith.addf %257, %260 : vector<16x8xf32>
    %c29 = arith.constant 29 : index
    %262 = memref.load %arg3[%c29] : memref<96xf32, #tpu.memory_space<smem>>
    %263 = vector.broadcast %262 : f32 to vector<16x8xf32>
    %264 = arith.mulf %7, %263 : vector<16x8xf32>
    %265 = arith.addf %261, %264 : vector<16x8xf32>
    %c37 = arith.constant 37 : index
    %266 = memref.load %arg3[%c37] : memref<96xf32, #tpu.memory_space<smem>>
    %267 = vector.broadcast %266 : f32 to vector<16x8xf32>
    %268 = arith.mulf %8, %267 : vector<16x8xf32>
    %269 = arith.addf %265, %268 : vector<16x8xf32>
    %c45 = arith.constant 45 : index
    %270 = memref.load %arg3[%c45] : memref<96xf32, #tpu.memory_space<smem>>
    %271 = vector.broadcast %270 : f32 to vector<16x8xf32>
    %272 = arith.mulf %9, %271 : vector<16x8xf32>
    %273 = arith.addf %269, %272 : vector<16x8xf32>
    %c53 = arith.constant 53 : index
    %274 = memref.load %arg3[%c53] : memref<96xf32, #tpu.memory_space<smem>>
    %275 = vector.broadcast %274 : f32 to vector<16x8xf32>
    %276 = arith.mulf %10, %275 : vector<16x8xf32>
    %277 = arith.addf %273, %276 : vector<16x8xf32>
    %c61 = arith.constant 61 : index
    %278 = memref.load %arg3[%c61] : memref<96xf32, #tpu.memory_space<smem>>
    %279 = vector.broadcast %278 : f32 to vector<16x8xf32>
    %280 = arith.mulf %11, %279 : vector<16x8xf32>
    %281 = arith.addf %277, %280 : vector<16x8xf32>
    %c69 = arith.constant 69 : index
    %282 = memref.load %arg3[%c69] : memref<96xf32, #tpu.memory_space<smem>>
    %283 = vector.broadcast %282 : f32 to vector<16x8xf32>
    %284 = arith.mulf %12, %283 : vector<16x8xf32>
    %285 = arith.addf %281, %284 : vector<16x8xf32>
    %c77 = arith.constant 77 : index
    %286 = memref.load %arg3[%c77] : memref<96xf32, #tpu.memory_space<smem>>
    %287 = vector.broadcast %286 : f32 to vector<16x8xf32>
    %288 = arith.mulf %13, %287 : vector<16x8xf32>
    %289 = arith.addf %285, %288 : vector<16x8xf32>
    %c85 = arith.constant 85 : index
    %290 = memref.load %arg3[%c85] : memref<96xf32, #tpu.memory_space<smem>>
    %291 = vector.broadcast %290 : f32 to vector<16x8xf32>
    %292 = arith.mulf %14, %291 : vector<16x8xf32>
    %293 = arith.addf %289, %292 : vector<16x8xf32>
    %c93 = arith.constant 93 : index
    %294 = memref.load %arg3[%c93] : memref<96xf32, #tpu.memory_space<smem>>
    %295 = vector.broadcast %294 : f32 to vector<16x8xf32>
    %296 = arith.mulf %15, %295 : vector<16x8xf32>
    %297 = arith.addf %293, %296 : vector<16x8xf32>
    %c6 = arith.constant 6 : index
    %298 = memref.load %arg3[%c6] : memref<96xf32, #tpu.memory_space<smem>>
    %299 = vector.broadcast %298 : f32 to vector<16x8xf32>
    %300 = arith.mulf %4, %299 : vector<16x8xf32>
    %c14 = arith.constant 14 : index
    %301 = memref.load %arg3[%c14] : memref<96xf32, #tpu.memory_space<smem>>
    %302 = vector.broadcast %301 : f32 to vector<16x8xf32>
    %303 = arith.mulf %5, %302 : vector<16x8xf32>
    %304 = arith.addf %300, %303 : vector<16x8xf32>
    %c22 = arith.constant 22 : index
    %305 = memref.load %arg3[%c22] : memref<96xf32, #tpu.memory_space<smem>>
    %306 = vector.broadcast %305 : f32 to vector<16x8xf32>
    %307 = arith.mulf %6, %306 : vector<16x8xf32>
    %308 = arith.addf %304, %307 : vector<16x8xf32>
    %c30 = arith.constant 30 : index
    %309 = memref.load %arg3[%c30] : memref<96xf32, #tpu.memory_space<smem>>
    %310 = vector.broadcast %309 : f32 to vector<16x8xf32>
    %311 = arith.mulf %7, %310 : vector<16x8xf32>
    %312 = arith.addf %308, %311 : vector<16x8xf32>
    %c38 = arith.constant 38 : index
    %313 = memref.load %arg3[%c38] : memref<96xf32, #tpu.memory_space<smem>>
    %314 = vector.broadcast %313 : f32 to vector<16x8xf32>
    %315 = arith.mulf %8, %314 : vector<16x8xf32>
    %316 = arith.addf %312, %315 : vector<16x8xf32>
    %c46 = arith.constant 46 : index
    %317 = memref.load %arg3[%c46] : memref<96xf32, #tpu.memory_space<smem>>
    %318 = vector.broadcast %317 : f32 to vector<16x8xf32>
    %319 = arith.mulf %9, %318 : vector<16x8xf32>
    %320 = arith.addf %316, %319 : vector<16x8xf32>
    %c54 = arith.constant 54 : index
    %321 = memref.load %arg3[%c54] : memref<96xf32, #tpu.memory_space<smem>>
    %322 = vector.broadcast %321 : f32 to vector<16x8xf32>
    %323 = arith.mulf %10, %322 : vector<16x8xf32>
    %324 = arith.addf %320, %323 : vector<16x8xf32>
    %c62 = arith.constant 62 : index
    %325 = memref.load %arg3[%c62] : memref<96xf32, #tpu.memory_space<smem>>
    %326 = vector.broadcast %325 : f32 to vector<16x8xf32>
    %327 = arith.mulf %11, %326 : vector<16x8xf32>
    %328 = arith.addf %324, %327 : vector<16x8xf32>
    %c70 = arith.constant 70 : index
    %329 = memref.load %arg3[%c70] : memref<96xf32, #tpu.memory_space<smem>>
    %330 = vector.broadcast %329 : f32 to vector<16x8xf32>
    %331 = arith.mulf %12, %330 : vector<16x8xf32>
    %332 = arith.addf %328, %331 : vector<16x8xf32>
    %c78 = arith.constant 78 : index
    %333 = memref.load %arg3[%c78] : memref<96xf32, #tpu.memory_space<smem>>
    %334 = vector.broadcast %333 : f32 to vector<16x8xf32>
    %335 = arith.mulf %13, %334 : vector<16x8xf32>
    %336 = arith.addf %332, %335 : vector<16x8xf32>
    %c86 = arith.constant 86 : index
    %337 = memref.load %arg3[%c86] : memref<96xf32, #tpu.memory_space<smem>>
    %338 = vector.broadcast %337 : f32 to vector<16x8xf32>
    %339 = arith.mulf %14, %338 : vector<16x8xf32>
    %340 = arith.addf %336, %339 : vector<16x8xf32>
    %c94 = arith.constant 94 : index
    %341 = memref.load %arg3[%c94] : memref<96xf32, #tpu.memory_space<smem>>
    %342 = vector.broadcast %341 : f32 to vector<16x8xf32>
    %343 = arith.mulf %15, %342 : vector<16x8xf32>
    %344 = arith.addf %340, %343 : vector<16x8xf32>
    %c7 = arith.constant 7 : index
    %345 = memref.load %arg3[%c7] : memref<96xf32, #tpu.memory_space<smem>>
    %346 = vector.broadcast %345 : f32 to vector<16x8xf32>
    %347 = arith.mulf %4, %346 : vector<16x8xf32>
    %c15 = arith.constant 15 : index
    %348 = memref.load %arg3[%c15] : memref<96xf32, #tpu.memory_space<smem>>
    %349 = vector.broadcast %348 : f32 to vector<16x8xf32>
    %350 = arith.mulf %5, %349 : vector<16x8xf32>
    %351 = arith.addf %347, %350 : vector<16x8xf32>
    %c23 = arith.constant 23 : index
    %352 = memref.load %arg3[%c23] : memref<96xf32, #tpu.memory_space<smem>>
    %353 = vector.broadcast %352 : f32 to vector<16x8xf32>
    %354 = arith.mulf %6, %353 : vector<16x8xf32>
    %355 = arith.addf %351, %354 : vector<16x8xf32>
    %c31 = arith.constant 31 : index
    %356 = memref.load %arg3[%c31] : memref<96xf32, #tpu.memory_space<smem>>
    %357 = vector.broadcast %356 : f32 to vector<16x8xf32>
    %358 = arith.mulf %7, %357 : vector<16x8xf32>
    %359 = arith.addf %355, %358 : vector<16x8xf32>
    %c39 = arith.constant 39 : index
    %360 = memref.load %arg3[%c39] : memref<96xf32, #tpu.memory_space<smem>>
    %361 = vector.broadcast %360 : f32 to vector<16x8xf32>
    %362 = arith.mulf %8, %361 : vector<16x8xf32>
    %363 = arith.addf %359, %362 : vector<16x8xf32>
    %c47 = arith.constant 47 : index
    %364 = memref.load %arg3[%c47] : memref<96xf32, #tpu.memory_space<smem>>
    %365 = vector.broadcast %364 : f32 to vector<16x8xf32>
    %366 = arith.mulf %9, %365 : vector<16x8xf32>
    %367 = arith.addf %363, %366 : vector<16x8xf32>
    %c55 = arith.constant 55 : index
    %368 = memref.load %arg3[%c55] : memref<96xf32, #tpu.memory_space<smem>>
    %369 = vector.broadcast %368 : f32 to vector<16x8xf32>
    %370 = arith.mulf %10, %369 : vector<16x8xf32>
    %371 = arith.addf %367, %370 : vector<16x8xf32>
    %c63 = arith.constant 63 : index
    %372 = memref.load %arg3[%c63] : memref<96xf32, #tpu.memory_space<smem>>
    %373 = vector.broadcast %372 : f32 to vector<16x8xf32>
    %374 = arith.mulf %11, %373 : vector<16x8xf32>
    %375 = arith.addf %371, %374 : vector<16x8xf32>
    %c71 = arith.constant 71 : index
    %376 = memref.load %arg3[%c71] : memref<96xf32, #tpu.memory_space<smem>>
    %377 = vector.broadcast %376 : f32 to vector<16x8xf32>
    %378 = arith.mulf %12, %377 : vector<16x8xf32>
    %379 = arith.addf %375, %378 : vector<16x8xf32>
    %c79 = arith.constant 79 : index
    %380 = memref.load %arg3[%c79] : memref<96xf32, #tpu.memory_space<smem>>
    %381 = vector.broadcast %380 : f32 to vector<16x8xf32>
    %382 = arith.mulf %13, %381 : vector<16x8xf32>
    %383 = arith.addf %379, %382 : vector<16x8xf32>
    %c87 = arith.constant 87 : index
    %384 = memref.load %arg3[%c87] : memref<96xf32, #tpu.memory_space<smem>>
    %385 = vector.broadcast %384 : f32 to vector<16x8xf32>
    %386 = arith.mulf %14, %385 : vector<16x8xf32>
    %387 = arith.addf %383, %386 : vector<16x8xf32>
    %c95 = arith.constant 95 : index
    %388 = memref.load %arg3[%c95] : memref<96xf32, #tpu.memory_space<smem>>
    %389 = vector.broadcast %388 : f32 to vector<16x8xf32>
    %390 = arith.mulf %15, %389 : vector<16x8xf32>
    %391 = arith.addf %387, %390 : vector<16x8xf32>
    %392 = tpu.concatenate %62, %109, %156, %203, %250, %297, %344, %391 in 1 : vector<16x8xf32>, vector<16x8xf32>, vector<16x8xf32>, vector<16x8xf32>, vector<16x8xf32>, vector<16x8xf32>, vector<16x8xf32>, vector<16x8xf32> -> vector<16x64xf32>
    %cst_5 = arith.constant 0.000000e+00 : f32
    %393 = vector.broadcast %cst_5 : f32 to vector<16x64xf32>
    %394 = arith.maximumf %392, %393 : vector<16x64xf32>
    %c0_6 = arith.constant 0 : index
    %c0_7 = arith.constant 0 : index
    %c0_8 = arith.constant 0 : index
    %395 = vector.load %arg4[%c0_6, %c0_7, %c0_8] : memref<1x16x64xf32, #tpu.memory_space<vmem>>, vector<1x16x64xf32>
    %396 = vector.shape_cast %395 : vector<1x16x64xf32> to vector<16x64xf32>
    %397 = vector.shape_cast %394 : vector<16x64xf32> to vector<1x16x64xf32>
    tpu.vector_store %arg4[%c0_6, %c0_7, %c0_8], %397 {strides = array<i32>} : memref<1x16x64xf32, #tpu.memory_space<vmem>>, vector<1x16x64xf32>,
    return
  }
  func.func @transform_0(%arg0: i32) -> (i32, i32, i32) {
    %c0_i32 = arith.constant 0 : i32
    %c0_i32_0 = arith.constant 0 : i32
    %c0_i32_1 = arith.constant 0 : i32
    return %arg0, %c0_i32, %c0_i32_0 : i32, i32, i32
  }
  func.func @transform_1(%arg0: i32) -> (i32, i32) {
    %c0_i32 = arith.constant 0 : i32
    %c0_i32_0 = arith.constant 0 : i32
    %c0_i32_1 = arith.constant 0 : i32
    return %c0_i32, %c0_i32_0 : i32, i32
  }
  func.func @transform_2(%arg0: i32) -> i32 {
    %c0_i32 = arith.constant 0 : i32
    %c0_i32_0 = arith.constant 0 : i32
    return %c0_i32 : i32
  }
  func.func @transform_3(%arg0: i32) -> (i32, i32, i32) {
    %c0_i32 = arith.constant 0 : i32
    %c0_i32_0 = arith.constant 0 : i32
    %c0_i32_1 = arith.constant 0 : i32
    return %arg0, %c0_i32, %c0_i32_0 : i32, i32, i32
  }
}

</mosaic_0001>

<llo_original>
// kernel: tpu_custom_call.1
$region0: #{tpu_custom_call.1}
  #allocation0 [shape = 'u32[]', space=smem, size = 0x4, offset = 0x4, fixed_abs, tag = 'smem constant byte address 0x4 - core index']
  #allocation1 [shape = 'u32[144,128]{1,0:T(1,128)}', space=vmem, size = 0x12000, scoped, tag = 'internal scratch']
  %s0 = inlined_call_operand.vmem [shape: f32[2,16,32], index: 0, kind: input, shape index: {}]
  %s1 = inlined_call_operand.vmem [shape: f32[48,16], index: 1, kind: input, shape index: {}]
  %s2 = inlined_call_operand.vmem [shape: f32[96], index: 2, kind: input, shape index: {}]
  %s3 = inlined_call_operand.hbm [shape: f32[2,16,64], index: 3, kind: output, shape index: {}]
  %s4 = sld [smem:[#allocation0]]
  $region49: #{tpu_custom_call.1} parent=0
    _
  %s6 = ssub.s32 1, %s4
  %s7 = scalar_select 0, %s6, %s4
  $region1: #{tpu_custom_call.1} parent=0
    #allocation2 [shape = 'u8[512]{0}', space=smem, size = 0x200, scoped, tag = 'input window, operand 2, single buffered']
    #allocation3 [shape = 's32[2]{0}', space=sflag, size = 0x8, scoped, tag = 'scoped memory for tpu_custom_call.1']
    #allocation4 [shape = 's32[2]{0}', space=sflag, size = 0x8, scoped, tag = 'scoped memory for tpu_custom_call.1']
    #allocation5 [shape = 'u8[16384]{0}', space=vmem, size = 0x4000, scoped, tag = 'output window, operand 0']
    %8 = vsyncpa [#allocation4], 0
    %9 = vsyncpa [#allocation3], 0
    %s10 = scalar_lea.sflag [#allocation3], 1
    %11 = vsyncpa %s10, 0
    loop: start=0, step=1, limit=4
    $region2: #{tpu_custom_call.1} parent=1 // loop_pre_header
      _
    $region3: #{tpu_custom_call.1} parent=1 // loop_header
      %s13 = sphi 0, %s17
      %p14 = scmp.ge.s32.totalorder %s13, 4
      %s23 = sphi 0, %s25
      %s26 = sphi 0, %s23
      %s27 = sphi 0, %s26
      %s43 = sphi 0, %s27
      %s47 = sphi 0, %s47
      %s49 = sphi 0, %s47
      %s50 = sphi 0, %s49
      %s64 = sphi 0, %s50
      %s68 = sphi 0, %s68
      %s70 = sphi 0, %s68
      %s71 = sphi 0, %s70
      %s85 = sphi 0, %s71
      %s91 = sphi 0, %s93
      %s94 = sphi 0, %s91
      %s95 = sphi 0, %s94
      %s111 = sphi 0, %s95
    $region4: #{tpu_custom_call.1} parent=1 // loop_header_branch
      %16 = sbr.rel (%p14) target = $region8
    $region5: #{tpu_custom_call.1} parent=1 // loop_body
      %s18 = ssub.s32 %s13, 1
      %s19 = ssub.s32 %s13, 2
      %s20 = sadd.s32 %s13, 1
      %s21 = ssub.s32 %s13, %s20
      %p22 = scmp.eq.s32.totalorder %s21, 0
      %s24 = sadd.s32 %s23, 1
      %s25 = scalar_select %p22, %s23, %s24
      %p28 = pneg %p22
      %p29 = scmp.eq.s32.totalorder %s13, 1
      %p30 = por %p28, %p29
      %p31 = scmp.ne.s32.totalorder %s23, %s26
      %p32 = scmp.eq.s32.totalorder %s13, 0
      %p33 = por %p31, %p32
      %p34 = scmp.ne.s32.totalorder %s23, %s26
      %p35 = scmp.eq.s32.totalorder %s18, 1
      %p36 = por %p34, %p35
      %p37 = scmp.ne.s32.totalorder %s26, %s27
      %p38 = scmp.eq.s32.totalorder %s18, 0
      %p39 = por %p37, %p38
      %p40 = scmp.ne.s32.totalorder %s26, %s27
      %p41 = scmp.eq.s32.totalorder %s19, 1
      %p42 = por %p40, %p41
      %p44 = scmp.ne.s32.totalorder %s27, %s43
      %p45 = scmp.eq.s32.totalorder %s19, 0
      %p46 = por %p44, %p45
      %s48 = sadd.s32 %s47, 1
      %p51 = scmp.eq.s32.totalorder %s13, 1
      %p52 = scmp.ne.s32.totalorder %s47, %s49
      %p53 = scmp.eq.s32.totalorder %s13, 0
      %p54 = por %p52, %p53
      %p55 = scmp.ne.s32.totalorder %s47, %s49
      %p56 = scmp.eq.s32.totalorder %s18, 1
      %p57 = por %p55, %p56
      %p58 = scmp.ne.s32.totalorder %s49, %s50
      %p59 = scmp.eq.s32.totalorder %s18, 0
      %p60 = por %p58, %p59
      %p61 = scmp.ne.s32.totalorder %s49, %s50
      %p62 = scmp.eq.s32.totalorder %s19, 1
      %p63 = por %p61, %p62
      %p65 = scmp.ne.s32.totalorder %s50, %s64
      %p66 = scmp.eq.s32.totalorder %s19, 0
      %p67 = por %p65, %p66
      %s69 = sadd.s32 %s68, 1
      %p72 = scmp.eq.s32.totalorder %s13, 1
      %p73 = scmp.ne.s32.totalorder %s68, %s70
      %p74 = scmp.eq.s32.totalorder %s13, 0
      %p75 = por %p73, %p74
      %p76 = scmp.ne.s32.totalorder %s68, %s70
      %p77 = scmp.eq.s32.totalorder %s18, 1
      %p78 = por %p76, %p77
      %p79 = scmp.ne.s32.totalorder %s70, %s71
      %p80 = scmp.eq.s32.totalorder %s18, 0
      %p81 = por %p79, %p80
      %p82 = scmp.ne.s32.totalorder %s70, %s71
      %p83 = scmp.eq.s32.totalorder %s19, 1
      %p84 = por %p82, %p83
      %p86 = scmp.ne.s32.totalorder %s71, %s85
      %p87 = scmp.eq.s32.totalorder %s19, 0
      %p88 = por %p86, %p87
      %s89 = ssub.s32 %s13, %s20
      %p90 = scmp.eq.s32.totalorder %s89, 0
      %s92 = sadd.s32 %s91, 1
      %s93 = scalar_select %p90, %s91, %s92
      %p96 = pneg %p90
      %p97 = scmp.eq.s32.totalorder %s13, 1
      %p98 = por %p96, %p97
      %p99 = scmp.ne.s32.totalorder %s91, %s94
      %p100 = scmp.eq.s32.totalorder %s13, 0
      %p101 = por %p99, %p100
      %p102 = scmp.ne.s32.totalorder %s91, %s94
      %p103 = scmp.eq.s32.totalorder %s18, 1
      %p104 = por %p102, %p103
      %p105 = scmp.ne.s32.totalorder %s94, %s95
      %p106 = scmp.eq.s32.totalorder %s18, 0
      %p107 = por %p105, %p106
      %p108 = scmp.ne.s32.totalorder %s94, %s95
      %p109 = scmp.eq.s32.totalorder %s19, 1
      %p110 = por %p108, %p109
      %p112 = scmp.ne.s32.totalorder %s95, %s111
      %p113 = scmp.eq.s32.totalorder %s19, 0
      %p114 = por %p112, %p113
      %p115 = scmp.le.s32.totalorder 1, %s13
      %p116 = scmp.lt.s32.totalorder %s13, 3
      %p117 = pnand %p115, %p116
      %p118 = pneg %p117
      // Predicated region
      $region9: #{tpu_custom_call.1} parent=5 // pred_check
        _
      $region10: #{tpu_custom_call.1} parent=5 // pred_check_branch
        %120 = sbr.rel (%p117) target = $region12
      $region11: #{tpu_custom_call.1} parent=5 // pred_region
        %s121 = ssub.s32 %s13, 1
        // Predicated region
        $region13: #{tpu_custom_call.1} parent=11 // pred_check
          %p122 = pneg %p60
        $region14: #{tpu_custom_call.1} parent=11 // pred_check_branch
          %124 = sbr.rel (%p122) target = $region16
        $region15: #{tpu_custom_call.1} parent=11 // pred_region
          _
        $region16: #{tpu_custom_call.1} parent=11 // pred_fallthru
          _
        // Predicated region
        $region17: #{tpu_custom_call.1} parent=11 // pred_check
          %p125 = pneg %p81
        $region18: #{tpu_custom_call.1} parent=11 // pred_check_branch
          %127 = sbr.rel (%p125) target = $region20
        $region19: #{tpu_custom_call.1} parent=11 // pred_region
          %s129 = ssub.s32 16, 16
          %130 = vsyncadd [#allocation4], %s129
          %s132 = sshll.u32 %s2, 4
          %s133 = int_to_ptr.vmem [resolvable:$true] %s132
          %135 = dma.vmem_to_smem %s133, 16, [#allocation2], [#allocation4]
        $region20: #{tpu_custom_call.1} parent=11 // pred_fallthru
          _
      $region12: #{tpu_custom_call.1} parent=5 // pred_fallthru
        _
      %p136 = scmp.lt.s32.totalorder %s13, 2
      // Predicated region
      $region21: #{tpu_custom_call.1} parent=5 // pred_check
        %p137 = pneg %p136
      $region22: #{tpu_custom_call.1} parent=5 // pred_check_branch
        %139 = sbr.rel (%p137) target = $region24
      $region23: #{tpu_custom_call.1} parent=5 // pred_region
        // Predicated region
        $region25: #{tpu_custom_call.1} parent=23 // pred_check
          %p140 = pneg %p33
        $region26: #{tpu_custom_call.1} parent=23 // pred_check_branch
          %142 = sbr.rel (%p140) target = $region28
        $region27: #{tpu_custom_call.1} parent=23 // pred_region
          %p143 = scmp.lt.s32.totalorder %s13, 1
          %s144 = scalar_select %p143, %s13, 1
          %s145 = smul.addr %s144, 2
          %s146 = smul.addr %s145, 8
          %s147 = scalar_lea.vmem %s0, %s146
        $region28: #{tpu_custom_call.1} parent=23 // pred_fallthru
          _
      $region24: #{tpu_custom_call.1} parent=5 // pred_fallthru
        _
      %p148 = scmp.le.s32.totalorder 1, %s13
      %p149 = scmp.lt.s32.totalorder %s13, 3
      %p150 = pnand %p148, %p149
      %p151 = pneg %p150
      // Predicated region
      $region29: #{tpu_custom_call.1} parent=5 // pred_check
        _
      $region30: #{tpu_custom_call.1} parent=5 // pred_check_branch
        %153 = sbr.rel (%p150) target = $region32
      $region31: #{tpu_custom_call.1} parent=5 // pred_region
        %s154 = ssub.s32 %s13, 1
        // Predicated region
        $region33: #{tpu_custom_call.1} parent=31 // pred_check
          %p155 = pneg %p81
        $region34: #{tpu_custom_call.1} parent=31 // pred_check_branch
          %157 = sbr.rel (%p155) target = $region36
        $region35: #{tpu_custom_call.1} parent=31 // pred_region
          %158 = dma.done [#allocation4], 16
        $region36: #{tpu_custom_call.1} parent=31 // pred_fallthru
          _
        %159 = sfence
        %p160 = scmp.lt.s32.totalorder %s18, 1
        %s161 = scalar_select %p160, %s18, 1
        %s162 = smul.addr %s161, 2
        %s163 = smul.addr %s162, 8
        %s164 = scalar_lea.vmem %s0, %s163
        %p165 = pneg %p39
        %p166 = pneg %p36
        %p167 = pneg %p60
        %p168 = pneg %p57
        %p169 = pneg %p81
        %p170 = pneg %p78
        %p171 = pneg %p107
        %p172 = pneg %p104
        %s173 = sand.u32 %s94, 1
        %s174 = scalar_lea.sflag [#allocation3], %s173
        %s175 = sand.u32 %s94, 1
        %s176 = smul.addr %s175, 16
        %s177 = scalar_lea.vmem [#allocation5], %s176
        %p178 = scmp.lt.s32.totalorder %s18, 1
        %s179 = scalar_select %p178, %s18, 1
        %s180 = smul.addr %s179, 2
        %s181 = smul.addr %s180, 8
        %s182 = scalar_lea.vmem %s0, %s181
        %v183 = vld [vmem:[%s1] sm:$0xff]
        %v184 = vld [vmem:[%s1 + $0x8] sm:$0xff]
        %v185 = vld [vmem:[%s1 + $0x10] sm:$0xff]
        %v186 = vld [vmem:[%s1 + $0x18] sm:$0xff]
        %v187 = vld [vmem:[%s1 + $0x20] sm:$0xff]
        %v188 = vld [vmem:[%s1 + $0x28] sm:$0xff]
        %v189 = vld [vmem:[%s182] sm:$0xff]
        %v190 = vld [vmem:[%s182 + $0x8] sm:$0xff]
        %vm191 = vcmask 130048
        %v193 = vsel %vm191, %v183, 0
        %v196 = vsel %vm191, %v184, 0
        %v199 = vsel %vm191, %v185, 0
        %v202 = vsel %vm191, %v186, 0
        %v205 = vsel %vm191, %v187, 0
        %v208 = vsel %vm191, %v188, 0
        %210 = vmatprep.subr.mxu0 0.0
        %211 = vmatpush1.msra.mxu0 %v189
        %212 = vmatprep.subr.mxu0 0.0
        %213 = vmatpush1.msra.mxu0 %v190
        %214 = vmatprep.subr.mxu0 0.0
        %215 = vmatpush1.msra.mxu0 0.0
        %216 = vmatprep.subr.mxu0 0.0
        %217 = vmatpush1.msra.mxu0 0.0
        %218 = vmatprep.subr.mxu0 0.0
        %219 = vmatpush1.msra.mxu0 0.0
        %220 = vmatprep.subr.mxu0 0.0
        %221 = vmatpush1.msra.mxu0 0.0
        %222 = vmatprep.subr.mxu0 0.0
        %223 = vmatpush1.msra.mxu0 0.0
        %224 = vmatprep.subr.mxu0 0.0
        %225 = vmatpush1.msra.mxu0 0.0
        %226 = vmatprep.subr.mxu0 0.0
        %227 = vmatpush1.msra.mxu0 0.0
        %228 = vmatprep.subr.mxu0 0.0
        %229 = vmatpush1.msra.mxu0 0.0
        %230 = vmatprep.subr.mxu0 0.0
        %231 = vmatpush1.msra.mxu0 0.0
        %232 = vmatprep.subr.mxu0 0.0
        %233 = vmatpush1.msra.mxu0 0.0
        %234 = vmatprep.subr.mxu0 0.0
        %235 = vmatpush1.msra.mxu0 0.0
        %236 = vmatprep.subr.mxu0 0.0
        %237 = vmatpush1.msra.mxu0 0.0
        %238 = vmatprep.subr.mxu0 0.0
        %239 = vmatpush1.msra.mxu0 0.0
        %240 = vmatprep.subr.mxu0 0.0
        %241 = vmatpush1.msra.mxu0 0.0
        %242 = vmatprep.subr.mxu0 0.0
        %243 = vmatpush1.msra.mxu0 0.0
        %244 = vmatprep.subr.mxu0 0.0
        %245 = vmatpush1.msra.mxu0 0.0
        %246 = vmatprep.subr.mxu0 0.0
        %247 = vmatpush1.msra.mxu0 0.0
        %248 = vmatprep.subr.mxu0 0.0
        %249 = vmatpush1.msra.mxu0 0.0
        %250 = vmatprep.subr.mxu0 0.0
        %251 = vmatpush1.msra.mxu0 0.0
        %252 = vmatprep.subr.mxu0 0.0
        %253 = vmatpush1.msra.mxu0 0.0
        %254 = vmatprep.subr.mxu0 0.0
        %255 = vmatpush1.msra.mxu0 0.0
        %256 = vmatprep.subr.mxu0 0.0
        %257 = vmatpush1.msra.mxu0 0.0
        %258 = vmatprep.subr.mxu0 0.0
        %259 = vmatpush1.msra.mxu0 0.0
        %260 = vmatprep.subr.mxu0 0.0
        %261 = vmatpush1.msra.mxu0 0.0
        %262 = vmatprep.subr.mxu0 0.0
        %263 = vmatpush1.msra.mxu0 0.0
        %264 = vmatprep.subr.mxu0 0.0
        %265 = vmatpush1.msra.mxu0 0.0
        %266 = vmatprep.subr.mxu0 0.0
        %267 = vmatpush1.msra.mxu0 0.0
        %268 = vmatprep.subr.mxu0 0.0
        %269 = vmatpush1.msra.mxu0 0.0
        %270 = vmatprep.subr.mxu0 0.0
        %271 = vmatpush1.msra.mxu0 0.0
        %272 = vmatprep.subr.mxu0 0.0
        %273 = vmatpush1.msra.mxu0 0.0
        %274 = vmatprep.mubr.f32.mxu0 0.0
        %275 = vmatmul.mubr.f32.gmra.mrb[0].mxu0 %v193
        %v276 = vpop.f32.mrb[0].mxu0
        %v277 = vadd.f32 0.0, %v276
        %v278 = vpop.f32.mrb[0].mxu0
        %279 = vmatprep.mubr.f32.mxu0 0.0
        %280 = vmatmul.mubr.f32.gmra.mrb[0].mxu0 %v196
        %v281 = vpop.f32.mrb[0].mxu0
        %v282 = vadd.f32 0.0, %v281
        %v283 = vpop.f32.mrb[0].mxu0
        %284 = vmatprep.mubr.f32.mxu0 0.0
        %285 = vmatmul.mubr.f32.gmra.mrb[0].mxu0 %v199
        %v286 = vpop.f32.mrb[0].mxu0
        %v287 = vadd.f32 0.0, %v286
        %v288 = vpop.f32.mrb[0].mxu0
        %289 = vmatprep.mubr.f32.mxu0 0.0
        %290 = vmatmul.mubr.f32.gmra.mrb[0].mxu0 %v202
        %v291 = vpop.f32.mrb[0].mxu0
        %v292 = vadd.f32 0.0, %v291
        %v293 = vpop.f32.mrb[0].mxu0
        %294 = vmatprep.mubr.f32.mxu0 0.0
        %295 = vmatmul.mubr.f32.gmra.mrb[0].mxu0 %v205
        %v296 = vpop.f32.mrb[0].mxu0
        %v297 = vadd.f32 0.0, %v296
        %v298 = vpop.f32.mrb[0].mxu0
        %299 = vmatprep.mubr.f32.mxu0 0.0
        %300 = vmatmul.mubr.f32.gmra.mrb[0].mxu0 %v208
        %v301 = vpop.f32.mrb[0].mxu0
        %v302 = vadd.f32 0.0, %v301
        %v303 = vpop.f32.mrb[0].mxu0
        %304 = vdwg.mxu0
        %s305 = sld [smem:[#allocation2]]
        %v306 = vstv %s305
        %v307 = vmul.f32 %v277, %v306
        %v308 = vmul.f32 %v282, %v306
        %s309 = sld [smem:[#allocation2 + $0x8]]
        %v310 = vstv %s309
        %v311 = vmul.f32 %v277, %v310
        %v312 = vmul.f32 %v282, %v310
        %315 = vrot.lane.b32.xlu0 %v311, 120
        %v316 = vpop.permute.xlu0 %315
        %317 = vrot.lane.b32.xlu0 %v312, 120
        %v318 = vpop.permute.xlu0 %317
        %v321 = vadd.f32 %v307, %v316
        %v322 = vadd.f32 %v308, %v318
        %s323 = sld [smem:[#allocation2 + $0x10]]
        %v324 = vstv %s323
        %v325 = vmul.f32 %v277, %v324
        %v326 = vmul.f32 %v282, %v324
        %329 = vrot.lane.b32.xlu0 %v325, 112
        %v330 = vpop.permute.xlu0 %329
        %331 = vrot.lane.b32.xlu0 %v326, 112
        %v332 = vpop.permute.xlu0 %331
        %v335 = vadd.f32 %v321, %v330
        %v336 = vadd.f32 %v322, %v332
        %s337 = sld [smem:[#allocation2 + $0x18]]
        %v338 = vstv %s337
        %v339 = vmul.f32 %v277, %v338
        %v340 = vmul.f32 %v282, %v338
        %343 = vrot.lane.b32.xlu0 %v339, 104
        %v344 = vpop.permute.xlu0 %343
        %345 = vrot.lane.b32.xlu0 %v340, 104
        %v346 = vpop.permute.xlu0 %345
        %v349 = vadd.f32 %v335, %v344
        %v350 = vadd.f32 %v336, %v346
        %s351 = sld [smem:[#allocation2 + $0x20]]
        %v352 = vstv %s351
        %v353 = vmul.f32 %v287, %v352
        %v354 = vmul.f32 %v292, %v352
        %v355 = vadd.f32 %v349, %v353
        %v356 = vadd.f32 %v350, %v354
        %s357 = sld [smem:[#allocation2 + $0x28]]
        %v358 = vstv %s357
        %v359 = vmul.f32 %v287, %v358
        %v360 = vmul.f32 %v292, %v358
        %363 = vrot.lane.b32.xlu0 %v359, 120
        %v364 = vpop.permute.xlu0 %363
        %365 = vrot.lane.b32.xlu0 %v360, 120
        %v366 = vpop.permute.xlu0 %365
        %v369 = vadd.f32 %v355, %v364
        %v370 = vadd.f32 %v356, %v366
        %s371 = sld [smem:[#allocation2 + $0x30]]
        %v372 = vstv %s371
        %v373 = vmul.f32 %v287, %v372
        %v374 = vmul.f32 %v292, %v372
        %377 = vrot.lane.b32.xlu0 %v373, 112
        %v378 = vpop.permute.xlu0 %377
        %379 = vrot.lane.b32.xlu0 %v374, 112
        %v380 = vpop.permute.xlu0 %379
        %v383 = vadd.f32 %v369, %v378
        %v384 = vadd.f32 %v370, %v380
        %s385 = sld [smem:[#allocation2 + $0x38]]
        %v386 = vstv %s385
        %v387 = vmul.f32 %v287, %v386
        %v388 = vmul.f32 %v292, %v386
        %391 = vrot.lane.b32.xlu0 %v387, 104
        %v392 = vpop.permute.xlu0 %391
        %393 = vrot.lane.b32.xlu0 %v388, 104
        %v394 = vpop.permute.xlu0 %393
        %v397 = vadd.f32 %v383, %v392
        %v398 = vadd.f32 %v384, %v394
        %s399 = sld [smem:[#allocation2 + $0x40]]
        %v400 = vstv %s399
        %v401 = vmul.f32 %v297, %v400
        %v402 = vmul.f32 %v302, %v400
        %v403 = vadd.f32 %v397, %v401
        %v404 = vadd.f32 %v398, %v402
        %s405 = sld [smem:[#allocation2 + $0x48]]
        %v406 = vstv %s405
        %v407 = vmul.f32 %v297, %v406
        %v408 = vmul.f32 %v302, %v406
        %411 = vrot.lane.b32.xlu0 %v407, 120
        %v412 = vpop.permute.xlu0 %411
        %413 = vrot.lane.b32.xlu0 %v408, 120
        %v414 = vpop.permute.xlu0 %413
        %v417 = vadd.f32 %v403, %v412
        %v418 = vadd.f32 %v404, %v414
        %s419 = sld [smem:[#allocation2 + $0x50]]
        %v420 = vstv %s419
        %v421 = vmul.f32 %v297, %v420
        %v422 = vmul.f32 %v302, %v420
        %425 = vrot.lane.b32.xlu0 %v421, 112
        %v426 = vpop.permute.xlu0 %425
        %427 = vrot.lane.b32.xlu0 %v422, 112
        %v428 = vpop.permute.xlu0 %427
        %v431 = vadd.f32 %v417, %v426
        %v432 = vadd.f32 %v418, %v428
        %s433 = sld [smem:[#allocation2 + $0x58]]
        %v434 = vstv %s433
        %v435 = vmul.f32 %v297, %v434
        %v436 = vmul.f32 %v302, %v434
        %439 = vrot.lane.b32.xlu0 %v435, 104
        %v440 = vpop.permute.xlu0 %439
        %441 = vrot.lane.b32.xlu0 %v436, 104
        %v442 = vpop.permute.xlu0 %441
        %v445 = vadd.f32 %v431, %v440
        %v446 = vadd.f32 %v432, %v442
        %s447 = sld [smem:[#allocation2 + $0x1]]
        %v448 = vstv %s447
        %v449 = vmul.f32 %v277, %v448
        %v450 = vmul.f32 %v282, %v448
        %s451 = sld [smem:[#allocation2 + $0x9]]
        %v452 = vstv %s451
        %v453 = vmul.f32 %v277, %v452
        %v454 = vmul.f32 %v282, %v452
        %457 = vrot.lane.b32.xlu0 %v453, 120
        %v458 = vpop.permute.xlu0 %457
        %459 = vrot.lane.b32.xlu0 %v454, 120
        %v460 = vpop.permute.xlu0 %459
        %v463 = vadd.f32 %v449, %v458
        %v464 = vadd.f32 %v450, %v460
        %s465 = sld [smem:[#allocation2 + $0x11]]
        %v466 = vstv %s465
        %v467 = vmul.f32 %v277, %v466
        %v468 = vmul.f32 %v282, %v466
        %471 = vrot.lane.b32.xlu0 %v467, 112
        %v472 = vpop.permute.xlu0 %471
        %473 = vrot.lane.b32.xlu0 %v468, 112
        %v474 = vpop.permute.xlu0 %473
        %v477 = vadd.f32 %v463, %v472
        %v478 = vadd.f32 %v464, %v474
        %s479 = sld [smem:[#allocation2 + $0x19]]
        %v480 = vstv %s479
        %v481 = vmul.f32 %v277, %v480
        %v482 = vmul.f32 %v282, %v480
        %485 = vrot.lane.b32.xlu0 %v481, 104
        %v486 = vpop.permute.xlu0 %485
        %487 = vrot.lane.b32.xlu0 %v482, 104
        %v488 = vpop.permute.xlu0 %487
        %v491 = vadd.f32 %v477, %v486
        %v492 = vadd.f32 %v478, %v488
        %s493 = sld [smem:[#allocation2 + $0x21]]
        %v494 = vstv %s493
        %v495 = vmul.f32 %v287, %v494
        %v496 = vmul.f32 %v292, %v494
        %v497 = vadd.f32 %v491, %v495
        %v498 = vadd.f32 %v492, %v496
        %s499 = sld [smem:[#allocation2 + $0x29]]
        %v500 = vstv %s499
        %v501 = vmul.f32 %v287, %v500
        %v502 = vmul.f32 %v292, %v500
        %505 = vrot.lane.b32.xlu0 %v501, 120
        %v506 = vpop.permute.xlu0 %505
        %507 = vrot.lane.b32.xlu0 %v502, 120
        %v508 = vpop.permute.xlu0 %507
        %v511 = vadd.f32 %v497, %v506
        %v512 = vadd.f32 %v498, %v508
        %s513 = sld [smem:[#allocation2 + $0x31]]
        %v514 = vstv %s513
        %v515 = vmul.f32 %v287, %v514
        %v516 = vmul.f32 %v292, %v514
        %519 = vrot.lane.b32.xlu0 %v515, 112
        %v520 = vpop.permute.xlu0 %519
        %521 = vrot.lane.b32.xlu0 %v516, 112
        %v522 = vpop.permute.xlu0 %521
        %v525 = vadd.f32 %v511, %v520
        %v526 = vadd.f32 %v512, %v522
        %s527 = sld [smem:[#allocation2 + $0x39]]
        %v528 = vstv %s527
        %v529 = vmul.f32 %v287, %v528
        %v530 = vmul.f32 %v292, %v528
        %533 = vrot.lane.b32.xlu0 %v529, 104
        %v534 = vpop.permute.xlu0 %533
        %535 = vrot.lane.b32.xlu0 %v530, 104
        %v536 = vpop.permute.xlu0 %535
        %v539 = vadd.f32 %v525, %v534
        %v540 = vadd.f32 %v526, %v536
        %s541 = sld [smem:[#allocation2 + $0x41]]
        %v542 = vstv %s541
        %v543 = vmul.f32 %v297, %v542
        %v544 = vmul.f32 %v302, %v542
        %v545 = vadd.f32 %v539, %v543
        %v546 = vadd.f32 %v540, %v544
        %s547 = sld [smem:[#allocation2 + $0x49]]
        %v548 = vstv %s547
        %v549 = vmul.f32 %v297, %v548
        %v550 = vmul.f32 %v302, %v548
        %553 = vrot.lane.b32.xlu0 %v549, 120
        %v554 = vpop.permute.xlu0 %553
        %555 = vrot.lane.b32.xlu0 %v550, 120
        %v556 = vpop.permute.xlu0 %555
        %v559 = vadd.f32 %v545, %v554
        %v560 = vadd.f32 %v546, %v556
        %s561 = sld [smem:[#allocation2 + $0x51]]
        %v562 = vstv %s561
        %v563 = vmul.f32 %v297, %v562
        %v564 = vmul.f32 %v302, %v562
        %567 = vrot.lane.b32.xlu0 %v563, 112
        %v568 = vpop.permute.xlu0 %567
        %569 = vrot.lane.b32.xlu0 %v564, 112
        %v570 = vpop.permute.xlu0 %569
        %v573 = vadd.f32 %v559, %v568
        %v574 = vadd.f32 %v560, %v570
        %s575 = sld [smem:[#allocation2 + $0x59]]
        %v576 = vstv %s575
        %v577 = vmul.f32 %v297, %v576
        %v578 = vmul.f32 %v302, %v576
        %581 = vrot.lane.b32.xlu0 %v577, 104
        %v582 = vpop.permute.xlu0 %581
        %583 = vrot.lane.b32.xlu0 %v578, 104
        %v584 = vpop.permute.xlu0 %583
        %v587 = vadd.f32 %v573, %v582
        %v588 = vadd.f32 %v574, %v584
        %s589 = sld [smem:[#allocation2 + $0x2]]
        %v590 = vstv %s589
        %v591 = vmul.f32 %v277, %v590
        %v592 = vmul.f32 %v282, %v590
        %s593 = sld [smem:[#allocation2 + $0xa]]
        %v594 = vstv %s593
        %v595 = vmul.f32 %v277, %v594
        %v596 = vmul.f32 %v282, %v594
        %599 = vrot.lane.b32.xlu0 %v595, 120
        %v600 = vpop.permute.xlu0 %599
        %601 = vrot.lane.b32.xlu0 %v596, 120
        %v602 = vpop.permute.xlu0 %601
        %v605 = vadd.f32 %v591, %v600
        %v606 = vadd.f32 %v592, %v602
        %s607 = sld [smem:[#allocation2 + $0x12]]
        %v608 = vstv %s607
        %v609 = vmul.f32 %v277, %v608
        %v610 = vmul.f32 %v282, %v608
        %613 = vrot.lane.b32.xlu0 %v609, 112
        %v614 = vpop.permute.xlu0 %613
        %615 = vrot.lane.b32.xlu0 %v610, 112
        %v616 = vpop.permute.xlu0 %615
        %v619 = vadd.f32 %v605, %v614
        %v620 = vadd.f32 %v606, %v616
        %s621 = sld [smem:[#allocation2 + $0x1a]]
        %v622 = vstv %s621
        %v623 = vmul.f32 %v277, %v622
        %v624 = vmul.f32 %v282, %v622
        %627 = vrot.lane.b32.xlu0 %v623, 104
        %v628 = vpop.permute.xlu0 %627
        %629 = vrot.lane.b32.xlu0 %v624, 104
        %v630 = vpop.permute.xlu0 %629
        %v633 = vadd.f32 %v619, %v628
        %v634 = vadd.f32 %v620, %v630
        %s635 = sld [smem:[#allocation2 + $0x22]]
        %v636 = vstv %s635
        %v637 = vmul.f32 %v287, %v636
        %v638 = vmul.f32 %v292, %v636
        %v639 = vadd.f32 %v633, %v637
        %v640 = vadd.f32 %v634, %v638
        %s641 = sld [smem:[#allocation2 + $0x2a]]
        %v642 = vstv %s641
        %v643 = vmul.f32 %v287, %v642
        %v644 = vmul.f32 %v292, %v642
        %647 = vrot.lane.b32.xlu0 %v643, 120
        %v648 = vpop.permute.xlu0 %647
        %649 = vrot.lane.b32.xlu0 %v644, 120
        %v650 = vpop.permute.xlu0 %649
        %v653 = vadd.f32 %v639, %v648
        %v654 = vadd.f32 %v640, %v650
        %s655 = sld [smem:[#allocation2 + $0x32]]
        %v656 = vstv %s655
        %v657 = vmul.f32 %v287, %v656
        %v658 = vmul.f32 %v292, %v656
        %661 = vrot.lane.b32.xlu0 %v657, 112
        %v662 = vpop.permute.xlu0 %661
        %663 = vrot.lane.b32.xlu0 %v658, 112
        %v664 = vpop.permute.xlu0 %663
        %v667 = vadd.f32 %v653, %v662
        %v668 = vadd.f32 %v654, %v664
        %s669 = sld [smem:[#allocation2 + $0x3a]]
        %v670 = vstv %s669
        %v671 = vmul.f32 %v287, %v670
        %v672 = vmul.f32 %v292, %v670
        %675 = vrot.lane.b32.xlu0 %v671, 104
        %v676 = vpop.permute.xlu0 %675
        %677 = vrot.lane.b32.xlu0 %v672, 104
        %v678 = vpop.permute.xlu0 %677
        %v681 = vadd.f32 %v667, %v676
        %v682 = vadd.f32 %v668, %v678
        %s683 = sld [smem:[#allocation2 + $0x42]]
        %v684 = vstv %s683
        %v685 = vmul.f32 %v297, %v684
        %v686 = vmul.f32 %v302, %v684
        %v687 = vadd.f32 %v681, %v685
        %v688 = vadd.f32 %v682, %v686
        %s689 = sld [smem:[#allocation2 + $0x4a]]
        %v690 = vstv %s689
        %v691 = vmul.f32 %v297, %v690
        %v692 = vmul.f32 %v302, %v690
        %695 = vrot.lane.b32.xlu0 %v691, 120
        %v696 = vpop.permute.xlu0 %695
        %697 = vrot.lane.b32.xlu0 %v692, 120
        %v698 = vpop.permute.xlu0 %697
        %v701 = vadd.f32 %v687, %v696
        %v702 = vadd.f32 %v688, %v698
        %s703 = sld [smem:[#allocation2 + $0x52]]
        %v704 = vstv %s703
        %v705 = vmul.f32 %v297, %v704
        %v706 = vmul.f32 %v302, %v704
        %709 = vrot.lane.b32.xlu0 %v705, 112
        %v710 = vpop.permute.xlu0 %709
        %711 = vrot.lane.b32.xlu0 %v706, 112
        %v712 = vpop.permute.xlu0 %711
        %v715 = vadd.f32 %v701, %v710
        %v716 = vadd.f32 %v702, %v712
        %s717 = sld [smem:[#allocation2 + $0x5a]]
        %v718 = vstv %s717
        %v719 = vmul.f32 %v297, %v718
        %v720 = vmul.f32 %v302, %v718
        %723 = vrot.lane.b32.xlu0 %v719, 104
        %v724 = vpop.permute.xlu0 %723
        %725 = vrot.lane.b32.xlu0 %v720, 104
        %v726 = vpop.permute.xlu0 %725
        %v729 = vadd.f32 %v715, %v724
        %v730 = vadd.f32 %v716, %v726
        %s731 = sld [smem:[#allocation2 + $0x3]]
        %v732 = vstv %s731
        %v733 = vmul.f32 %v277, %v732
        %v734 = vmul.f32 %v282, %v732
        %s735 = sld [smem:[#allocation2 + $0xb]]
        %v736 = vstv %s735
        %v737 = vmul.f32 %v277, %v736
        %v738 = vmul.f32 %v282, %v736
        %741 = vrot.lane.b32.xlu0 %v737, 120
        %v742 = vpop.permute.xlu0 %741
        %743 = vrot.lane.b32.xlu0 %v738, 120
        %v744 = vpop.permute.xlu0 %743
        %v747 = vadd.f32 %v733, %v742
        %v748 = vadd.f32 %v734, %v744
        %s749 = sld [smem:[#allocation2 + $0x13]]
        %v750 = vstv %s749
        %v751 = vmul.f32 %v277, %v750
        %v752 = vmul.f32 %v282, %v750
        %755 = vrot.lane.b32.xlu0 %v751, 112
        %v756 = vpop.permute.xlu0 %755
        %757 = vrot.lane.b32.xlu0 %v752, 112
        %v758 = vpop.permute.xlu0 %757
        %v761 = vadd.f32 %v747, %v756
        %v762 = vadd.f32 %v748, %v758
        %s763 = sld [smem:[#allocation2 + $0x1b]]
        %v764 = vstv %s763
        %v765 = vmul.f32 %v277, %v764
        %v766 = vmul.f32 %v282, %v764
        %769 = vrot.lane.b32.xlu0 %v765, 104
        %v770 = vpop.permute.xlu0 %769
        %771 = vrot.lane.b32.xlu0 %v766, 104
        %v772 = vpop.permute.xlu0 %771
        %v775 = vadd.f32 %v761, %v770
        %v776 = vadd.f32 %v762, %v772
        %s777 = sld [smem:[#allocation2 + $0x23]]
        %v778 = vstv %s777
        %v779 = vmul.f32 %v287, %v778
        %v780 = vmul.f32 %v292, %v778
        %v781 = vadd.f32 %v775, %v779
        %v782 = vadd.f32 %v776, %v780
        %s783 = sld [smem:[#allocation2 + $0x2b]]
        %v784 = vstv %s783
        %v785 = vmul.f32 %v287, %v784
        %v786 = vmul.f32 %v292, %v784
        %789 = vrot.lane.b32.xlu0 %v785, 120
        %v790 = vpop.permute.xlu0 %789
        %791 = vrot.lane.b32.xlu0 %v786, 120
        %v792 = vpop.permute.xlu0 %791
        %v795 = vadd.f32 %v781, %v790
        %v796 = vadd.f32 %v782, %v792
        %s797 = sld [smem:[#allocation2 + $0x33]]
        %v798 = vstv %s797
        %v799 = vmul.f32 %v287, %v798
        %v800 = vmul.f32 %v292, %v798
        %803 = vrot.lane.b32.xlu0 %v799, 112
        %v804 = vpop.permute.xlu0 %803
        %805 = vrot.lane.b32.xlu0 %v800, 112
        %v806 = vpop.permute.xlu0 %805
        %v809 = vadd.f32 %v795, %v804
        %v810 = vadd.f32 %v796, %v806
        %s811 = sld [smem:[#allocation2 + $0x3b]]
        %v812 = vstv %s811
        %v813 = vmul.f32 %v287, %v812
        %v814 = vmul.f32 %v292, %v812
        %817 = vrot.lane.b32.xlu0 %v813, 104
        %v818 = vpop.permute.xlu0 %817
        %819 = vrot.lane.b32.xlu0 %v814, 104
        %v820 = vpop.permute.xlu0 %819
        %v823 = vadd.f32 %v809, %v818
        %v824 = vadd.f32 %v810, %v820
        %s825 = sld [smem:[#allocation2 + $0x43]]
        %v826 = vstv %s825
        %v827 = vmul.f32 %v297, %v826
        %v828 = vmul.f32 %v302, %v826
        %v829 = vadd.f32 %v823, %v827
        %v830 = vadd.f32 %v824, %v828
        %s831 = sld [smem:[#allocation2 + $0x4b]]
        %v832 = vstv %s831
        %v833 = vmul.f32 %v297, %v832
        %v834 = vmul.f32 %v302, %v832
        %837 = vrot.lane.b32.xlu0 %v833, 120
        %v838 = vpop.permute.xlu0 %837
        %839 = vrot.lane.b32.xlu0 %v834, 120
        %v840 = vpop.permute.xlu0 %839
        %v843 = vadd.f32 %v829, %v838
        %v844 = vadd.f32 %v830, %v840
        %s845 = sld [smem:[#allocation2 + $0x53]]
        %v846 = vstv %s845
        %v847 = vmul.f32 %v297, %v846
        %v848 = vmul.f32 %v302, %v846
        %851 = vrot.lane.b32.xlu0 %v847, 112
        %v852 = vpop.permute.xlu0 %851
        %853 = vrot.lane.b32.xlu0 %v848, 112
        %v854 = vpop.permute.xlu0 %853
        %v857 = vadd.f32 %v843, %v852
        %v858 = vadd.f32 %v844, %v854
        %s859 = sld [smem:[#allocation2 + $0x5b]]
        %v860 = vstv %s859
        %v861 = vmul.f32 %v297, %v860
        %v862 = vmul.f32 %v302, %v860
        %865 = vrot.lane.b32.xlu0 %v861, 104
        %v866 = vpop.permute.xlu0 %865
        %867 = vrot.lane.b32.xlu0 %v862, 104
        %v868 = vpop.permute.xlu0 %867
        %v871 = vadd.f32 %v857, %v866
        %v872 = vadd.f32 %v858, %v868
        %s873 = sld [smem:[#allocation2 + $0x4]]
        %v874 = vstv %s873
        %v875 = vmul.f32 %v277, %v874
        %v876 = vmul.f32 %v282, %v874
        %s877 = sld [smem:[#allocation2 + $0xc]]
        %v878 = vstv %s877
        %v879 = vmul.f32 %v277, %v878
        %v880 = vmul.f32 %v282, %v878
        %883 = vrot.lane.b32.xlu0 %v879, 120
        %v884 = vpop.permute.xlu0 %883
        %885 = vrot.lane.b32.xlu0 %v880, 120
        %v886 = vpop.permute.xlu0 %885
        %v889 = vadd.f32 %v875, %v884
        %v890 = vadd.f32 %v876, %v886
        %s891 = sld [smem:[#allocation2 + $0x14]]
        %v892 = vstv %s891
        %v893 = vmul.f32 %v277, %v892
        %v894 = vmul.f32 %v282, %v892
        %897 = vrot.lane.b32.xlu0 %v893, 112
        %v898 = vpop.permute.xlu0 %897
        %899 = vrot.lane.b32.xlu0 %v894, 112
        %v900 = vpop.permute.xlu0 %899
        %v903 = vadd.f32 %v889, %v898
        %v904 = vadd.f32 %v890, %v900
        %s905 = sld [smem:[#allocation2 + $0x1c]]
        %v906 = vstv %s905
        %v907 = vmul.f32 %v277, %v906
        %v908 = vmul.f32 %v282, %v906
        %911 = vrot.lane.b32.xlu0 %v907, 104
        %v912 = vpop.permute.xlu0 %911
        %913 = vrot.lane.b32.xlu0 %v908, 104
        %v914 = vpop.permute.xlu0 %913
        %v917 = vadd.f32 %v903, %v912
        %v918 = vadd.f32 %v904, %v914
        %s919 = sld [smem:[#allocation2 + $0x24]]
        %v920 = vstv %s919
        %v921 = vmul.f32 %v287, %v920
        %v922 = vmul.f32 %v292, %v920
        %v923 = vadd.f32 %v917, %v921
        %v924 = vadd.f32 %v918, %v922
        %s925 = sld [smem:[#allocation2 + $0x2c]]
        %v926 = vstv %s925
        %v927 = vmul.f32 %v287, %v926
        %v928 = vmul.f32 %v292, %v926
        %931 = vrot.lane.b32.xlu0 %v927, 120
        %v932 = vpop.permute.xlu0 %931
        %933 = vrot.lane.b32.xlu0 %v928, 120
        %v934 = vpop.permute.xlu0 %933
        %v937 = vadd.f32 %v923, %v932
        %v938 = vadd.f32 %v924, %v934
        %s939 = sld [smem:[#allocation2 + $0x34]]
        %v940 = vstv %s939
        %v941 = vmul.f32 %v287, %v940
        %v942 = vmul.f32 %v292, %v940
        %945 = vrot.lane.b32.xlu0 %v941, 112
        %v946 = vpop.permute.xlu0 %945
        %947 = vrot.lane.b32.xlu0 %v942, 112
        %v948 = vpop.permute.xlu0 %947
        %v951 = vadd.f32 %v937, %v946
        %v952 = vadd.f32 %v938, %v948
        %s953 = sld [smem:[#allocation2 + $0x3c]]
        %v954 = vstv %s953
        %v955 = vmul.f32 %v287, %v954
        %v956 = vmul.f32 %v292, %v954
        %959 = vrot.lane.b32.xlu0 %v955, 104
        %v960 = vpop.permute.xlu0 %959
        %961 = vrot.lane.b32.xlu0 %v956, 104
        %v962 = vpop.permute.xlu0 %961
        %v965 = vadd.f32 %v951, %v960
        %v966 = vadd.f32 %v952, %v962
        %s967 = sld [smem:[#allocation2 + $0x44]]
        %v968 = vstv %s967
        %v969 = vmul.f32 %v297, %v968
        %v970 = vmul.f32 %v302, %v968
        %v971 = vadd.f32 %v965, %v969
        %v972 = vadd.f32 %v966, %v970
        %s973 = sld [smem:[#allocation2 + $0x4c]]
        %v974 = vstv %s973
        %v975 = vmul.f32 %v297, %v974
        %v976 = vmul.f32 %v302, %v974
        %979 = vrot.lane.b32.xlu0 %v975, 120
        %v980 = vpop.permute.xlu0 %979
        %981 = vrot.lane.b32.xlu0 %v976, 120
        %v982 = vpop.permute.xlu0 %981
        %v985 = vadd.f32 %v971, %v980
        %v986 = vadd.f32 %v972, %v982
        %s987 = sld [smem:[#allocation2 + $0x54]]
        %v988 = vstv %s987
        %v989 = vmul.f32 %v297, %v988
        %v990 = vmul.f32 %v302, %v988
        %993 = vrot.lane.b32.xlu0 %v989, 112
        %v994 = vpop.permute.xlu0 %993
        %995 = vrot.lane.b32.xlu0 %v990, 112
        %v996 = vpop.permute.xlu0 %995
        %v999 = vadd.f32 %v985, %v994
        %v1000 = vadd.f32 %v986, %v996
        %s1001 = sld [smem:[#allocation2 + $0x5c]]
        %v1002 = vstv %s1001
        %v1003 = vmul.f32 %v297, %v1002
        %v1004 = vmul.f32 %v302, %v1002
        %1007 = vrot.lane.b32.xlu0 %v1003, 104
        %v1008 = vpop.permute.xlu0 %1007
        %1009 = vrot.lane.b32.xlu0 %v1004, 104
        %v1010 = vpop.permute.xlu0 %1009
        %v1013 = vadd.f32 %v999, %v1008
        %v1014 = vadd.f32 %v1000, %v1010
        %s1015 = sld [smem:[#allocation2 + $0x5]]
        %v1016 = vstv %s1015
        %v1017 = vmul.f32 %v277, %v1016
        %v1018 = vmul.f32 %v282, %v1016
        %s1019 = sld [smem:[#allocation2 + $0xd]]
        %v1020 = vstv %s1019
        %v1021 = vmul.f32 %v277, %v1020
        %v1022 = vmul.f32 %v282, %v1020
        %1025 = vrot.lane.b32.xlu0 %v1021, 120
        %v1026 = vpop.permute.xlu0 %1025
        %1027 = vrot.lane.b32.xlu0 %v1022, 120
        %v1028 = vpop.permute.xlu0 %1027
        %v1031 = vadd.f32 %v1017, %v1026
        %v1032 = vadd.f32 %v1018, %v1028
        %s1033 = sld [smem:[#allocation2 + $0x15]]
        %v1034 = vstv %s1033
        %v1035 = vmul.f32 %v277, %v1034
        %v1036 = vmul.f32 %v282, %v1034
        %1039 = vrot.lane.b32.xlu0 %v1035, 112
        %v1040 = vpop.permute.xlu0 %1039
        %1041 = vrot.lane.b32.xlu0 %v1036, 112
        %v1042 = vpop.permute.xlu0 %1041
        %v1045 = vadd.f32 %v1031, %v1040
        %v1046 = vadd.f32 %v1032, %v1042
        %s1047 = sld [smem:[#allocation2 + $0x1d]]
        %v1048 = vstv %s1047
        %v1049 = vmul.f32 %v277, %v1048
        %v1050 = vmul.f32 %v282, %v1048
        %1053 = vrot.lane.b32.xlu0 %v1049, 104
        %v1054 = vpop.permute.xlu0 %1053
        %1055 = vrot.lane.b32.xlu0 %v1050, 104
        %v1056 = vpop.permute.xlu0 %1055
        %v1059 = vadd.f32 %v1045, %v1054
        %v1060 = vadd.f32 %v1046, %v1056
        %s1061 = sld [smem:[#allocation2 + $0x25]]
        %v1062 = vstv %s1061
        %v1063 = vmul.f32 %v287, %v1062
        %v1064 = vmul.f32 %v292, %v1062
        %v1065 = vadd.f32 %v1059, %v1063
        %v1066 = vadd.f32 %v1060, %v1064
        %s1067 = sld [smem:[#allocation2 + $0x2d]]
        %v1068 = vstv %s1067
        %v1069 = vmul.f32 %v287, %v1068
        %v1070 = vmul.f32 %v292, %v1068
        %1073 = vrot.lane.b32.xlu0 %v1069, 120
        %v1074 = vpop.permute.xlu0 %1073
        %1075 = vrot.lane.b32.xlu0 %v1070, 120
        %v1076 = vpop.permute.xlu0 %1075
        %v1079 = vadd.f32 %v1065, %v1074
        %v1080 = vadd.f32 %v1066, %v1076
        %s1081 = sld [smem:[#allocation2 + $0x35]]
        %v1082 = vstv %s1081
        %v1083 = vmul.f32 %v287, %v1082
        %v1084 = vmul.f32 %v292, %v1082
        %1087 = vrot.lane.b32.xlu0 %v1083, 112
        %v1088 = vpop.permute.xlu0 %1087
        %1089 = vrot.lane.b32.xlu0 %v1084, 112
        %v1090 = vpop.permute.xlu0 %1089
        %v1093 = vadd.f32 %v1079, %v1088
        %v1094 = vadd.f32 %v1080, %v1090
        %s1095 = sld [smem:[#allocation2 + $0x3d]]
        %v1096 = vstv %s1095
        %v1097 = vmul.f32 %v287, %v1096
        %v1098 = vmul.f32 %v292, %v1096
        %1101 = vrot.lane.b32.xlu0 %v1097, 104
        %v1102 = vpop.permute.xlu0 %1101
        %1103 = vrot.lane.b32.xlu0 %v1098, 104
        %v1104 = vpop.permute.xlu0 %1103
        %v1107 = vadd.f32 %v1093, %v1102
        %v1108 = vadd.f32 %v1094, %v1104
        %s1109 = sld [smem:[#allocation2 + $0x45]]
        %v1110 = vstv %s1109
        %v1111 = vmul.f32 %v297, %v1110
        %v1112 = vmul.f32 %v302, %v1110
        %v1113 = vadd.f32 %v1107, %v1111
        %v1114 = vadd.f32 %v1108, %v1112
        %s1115 = sld [smem:[#allocation2 + $0x4d]]
        %v1116 = vstv %s1115
        %v1117 = vmul.f32 %v297, %v1116
        %v1118 = vmul.f32 %v302, %v1116
        %1121 = vrot.lane.b32.xlu0 %v1117, 120
        %v1122 = vpop.permute.xlu0 %1121
        %1123 = vrot.lane.b32.xlu0 %v1118, 120
        %v1124 = vpop.permute.xlu0 %1123
        %v1127 = vadd.f32 %v1113, %v1122
        %v1128 = vadd.f32 %v1114, %v1124
        %s1129 = sld [smem:[#allocation2 + $0x55]]
        %v1130 = vstv %s1129
        %v1131 = vmul.f32 %v297, %v1130
        %v1132 = vmul.f32 %v302, %v1130
        %1135 = vrot.lane.b32.xlu0 %v1131, 112
        %v1136 = vpop.permute.xlu0 %1135
        %1137 = vrot.lane.b32.xlu0 %v1132, 112
        %v1138 = vpop.permute.xlu0 %1137
        %v1141 = vadd.f32 %v1127, %v1136
        %v1142 = vadd.f32 %v1128, %v1138
        %s1143 = sld [smem:[#allocation2 + $0x5d]]
        %v1144 = vstv %s1143
        %v1145 = vmul.f32 %v297, %v1144
        %v1146 = vmul.f32 %v302, %v1144
        %1149 = vrot.lane.b32.xlu0 %v1145, 104
        %v1150 = vpop.permute.xlu0 %1149
        %1151 = vrot.lane.b32.xlu0 %v1146, 104
        %v1152 = vpop.permute.xlu0 %1151
        %v1155 = vadd.f32 %v1141, %v1150
        %v1156 = vadd.f32 %v1142, %v1152
        %s1157 = sld [smem:[#allocation2 + $0x6]]
        %v1158 = vstv %s1157
        %v1159 = vmul.f32 %v277, %v1158
        %v1160 = vmul.f32 %v282, %v1158
        %s1161 = sld [smem:[#allocation2 + $0xe]]
        %v1162 = vstv %s1161
        %v1163 = vmul.f32 %v277, %v1162
        %v1164 = vmul.f32 %v282, %v1162
        %1167 = vrot.lane.b32.xlu0 %v1163, 120
        %v1168 = vpop.permute.xlu0 %1167
        %1169 = vrot.lane.b32.xlu0 %v1164, 120
        %v1170 = vpop.permute.xlu0 %1169
        %v1173 = vadd.f32 %v1159, %v1168
        %v1174 = vadd.f32 %v1160, %v1170
        %s1175 = sld [smem:[#allocation2 + $0x16]]
        %v1176 = vstv %s1175
        %v1177 = vmul.f32 %v277, %v1176
        %v1178 = vmul.f32 %v282, %v1176
        %1181 = vrot.lane.b32.xlu0 %v1177, 112
        %v1182 = vpop.permute.xlu0 %1181
        %1183 = vrot.lane.b32.xlu0 %v1178, 112
        %v1184 = vpop.permute.xlu0 %1183
        %v1187 = vadd.f32 %v1173, %v1182
        %v1188 = vadd.f32 %v1174, %v1184
        %s1189 = sld [smem:[#allocation2 + $0x1e]]
        %v1190 = vstv %s1189
        %v1191 = vmul.f32 %v277, %v1190
        %v1192 = vmul.f32 %v282, %v1190
        %1195 = vrot.lane.b32.xlu0 %v1191, 104
        %v1196 = vpop.permute.xlu0 %1195
        %1197 = vrot.lane.b32.xlu0 %v1192, 104
        %v1198 = vpop.permute.xlu0 %1197
        %v1201 = vadd.f32 %v1187, %v1196
        %v1202 = vadd.f32 %v1188, %v1198
        %s1203 = sld [smem:[#allocation2 + $0x26]]
        %v1204 = vstv %s1203
        %v1205 = vmul.f32 %v287, %v1204
        %v1206 = vmul.f32 %v292, %v1204
        %v1207 = vadd.f32 %v1201, %v1205
        %v1208 = vadd.f32 %v1202, %v1206
        %s1209 = sld [smem:[#allocation2 + $0x2e]]
        %v1210 = vstv %s1209
        %v1211 = vmul.f32 %v287, %v1210
        %v1212 = vmul.f32 %v292, %v1210
        %1215 = vrot.lane.b32.xlu0 %v1211, 120
        %v1216 = vpop.permute.xlu0 %1215
        %1217 = vrot.lane.b32.xlu0 %v1212, 120
        %v1218 = vpop.permute.xlu0 %1217
        %v1221 = vadd.f32 %v1207, %v1216
        %v1222 = vadd.f32 %v1208, %v1218
        %s1223 = sld [smem:[#allocation2 + $0x36]]
        %v1224 = vstv %s1223
        %v1225 = vmul.f32 %v287, %v1224
        %v1226 = vmul.f32 %v292, %v1224
        %1229 = vrot.lane.b32.xlu0 %v1225, 112
        %v1230 = vpop.permute.xlu0 %1229
        %1231 = vrot.lane.b32.xlu0 %v1226, 112
        %v1232 = vpop.permute.xlu0 %1231
        %v1235 = vadd.f32 %v1221, %v1230
        %v1236 = vadd.f32 %v1222, %v1232
        %s1237 = sld [smem:[#allocation2 + $0x3e]]
        %v1238 = vstv %s1237
        %v1239 = vmul.f32 %v287, %v1238
        %v1240 = vmul.f32 %v292, %v1238
        %1243 = vrot.lane.b32.xlu0 %v1239, 104
        %v1244 = vpop.permute.xlu0 %1243
        %1245 = vrot.lane.b32.xlu0 %v1240, 104
        %v1246 = vpop.permute.xlu0 %1245
        %v1249 = vadd.f32 %v1235, %v1244
        %v1250 = vadd.f32 %v1236, %v1246
        %s1251 = sld [smem:[#allocation2 + $0x46]]
        %v1252 = vstv %s1251
        %v1253 = vmul.f32 %v297, %v1252
        %v1254 = vmul.f32 %v302, %v1252
        %v1255 = vadd.f32 %v1249, %v1253
        %v1256 = vadd.f32 %v1250, %v1254
        %s1257 = sld [smem:[#allocation2 + $0x4e]]
        %v1258 = vstv %s1257
        %v1259 = vmul.f32 %v297, %v1258
        %v1260 = vmul.f32 %v302, %v1258
        %1263 = vrot.lane.b32.xlu0 %v1259, 120
        %v1264 = vpop.permute.xlu0 %1263
        %1265 = vrot.lane.b32.xlu0 %v1260, 120
        %v1266 = vpop.permute.xlu0 %1265
        %v1269 = vadd.f32 %v1255, %v1264
        %v1270 = vadd.f32 %v1256, %v1266
        %s1271 = sld [smem:[#allocation2 + $0x56]]
        %v1272 = vstv %s1271
        %v1273 = vmul.f32 %v297, %v1272
        %v1274 = vmul.f32 %v302, %v1272
        %1277 = vrot.lane.b32.xlu0 %v1273, 112
        %v1278 = vpop.permute.xlu0 %1277
        %1279 = vrot.lane.b32.xlu0 %v1274, 112
        %v1280 = vpop.permute.xlu0 %1279
        %v1283 = vadd.f32 %v1269, %v1278
        %v1284 = vadd.f32 %v1270, %v1280
        %s1285 = sld [smem:[#allocation2 + $0x5e]]
        %v1286 = vstv %s1285
        %v1287 = vmul.f32 %v297, %v1286
        %v1288 = vmul.f32 %v302, %v1286
        %1291 = vrot.lane.b32.xlu0 %v1287, 104
        %v1292 = vpop.permute.xlu0 %1291
        %1293 = vrot.lane.b32.xlu0 %v1288, 104
        %v1294 = vpop.permute.xlu0 %1293
        %v1297 = vadd.f32 %v1283, %v1292
        %v1298 = vadd.f32 %v1284, %v1294
        %s1299 = sld [smem:[#allocation2 + $0x7]]
        %v1300 = vstv %s1299
        %v1301 = vmul.f32 %v277, %v1300
        %v1302 = vmul.f32 %v282, %v1300
        %s1303 = sld [smem:[#allocation2 + $0xf]]
        %v1304 = vstv %s1303
        %v1305 = vmul.f32 %v277, %v1304
        %v1306 = vmul.f32 %v282, %v1304
        %1309 = vrot.lane.b32.xlu0 %v1305, 120
        %v1310 = vpop.permute.xlu0 %1309
        %1311 = vrot.lane.b32.xlu0 %v1306, 120
        %v1312 = vpop.permute.xlu0 %1311
        %v1315 = vadd.f32 %v1301, %v1310
        %v1316 = vadd.f32 %v1302, %v1312
        %s1317 = sld [smem:[#allocation2 + $0x17]]
        %v1318 = vstv %s1317
        %v1319 = vmul.f32 %v277, %v1318
        %v1320 = vmul.f32 %v282, %v1318
        %1323 = vrot.lane.b32.xlu0 %v1319, 112
        %v1324 = vpop.permute.xlu0 %1323
        %1325 = vrot.lane.b32.xlu0 %v1320, 112
        %v1326 = vpop.permute.xlu0 %1325
        %v1329 = vadd.f32 %v1315, %v1324
        %v1330 = vadd.f32 %v1316, %v1326
        %s1331 = sld [smem:[#allocation2 + $0x1f]]
        %v1332 = vstv %s1331
        %v1333 = vmul.f32 %v277, %v1332
        %v1334 = vmul.f32 %v282, %v1332
        %1337 = vrot.lane.b32.xlu0 %v1333, 104
        %v1338 = vpop.permute.xlu0 %1337
        %1339 = vrot.lane.b32.xlu0 %v1334, 104
        %v1340 = vpop.permute.xlu0 %1339
        %v1343 = vadd.f32 %v1329, %v1338
        %v1344 = vadd.f32 %v1330, %v1340
        %s1345 = sld [smem:[#allocation2 + $0x27]]
        %v1346 = vstv %s1345
        %v1347 = vmul.f32 %v287, %v1346
        %v1348 = vmul.f32 %v292, %v1346
        %v1349 = vadd.f32 %v1343, %v1347
        %v1350 = vadd.f32 %v1344, %v1348
        %s1351 = sld [smem:[#allocation2 + $0x2f]]
        %v1352 = vstv %s1351
        %v1353 = vmul.f32 %v287, %v1352
        %v1354 = vmul.f32 %v292, %v1352
        %1357 = vrot.lane.b32.xlu0 %v1353, 120
        %v1358 = vpop.permute.xlu0 %1357
        %1359 = vrot.lane.b32.xlu0 %v1354, 120
        %v1360 = vpop.permute.xlu0 %1359
        %v1363 = vadd.f32 %v1349, %v1358
        %v1364 = vadd.f32 %v1350, %v1360
        %s1365 = sld [smem:[#allocation2 + $0x37]]
        %v1366 = vstv %s1365
        %v1367 = vmul.f32 %v287, %v1366
        %v1368 = vmul.f32 %v292, %v1366
        %1371 = vrot.lane.b32.xlu0 %v1367, 112
        %v1372 = vpop.permute.xlu0 %1371
        %1373 = vrot.lane.b32.xlu0 %v1368, 112
        %v1374 = vpop.permute.xlu0 %1373
        %v1377 = vadd.f32 %v1363, %v1372
        %v1378 = vadd.f32 %v1364, %v1374
        %s1379 = sld [smem:[#allocation2 + $0x3f]]
        %v1380 = vstv %s1379
        %v1381 = vmul.f32 %v287, %v1380
        %v1382 = vmul.f32 %v292, %v1380
        %1385 = vrot.lane.b32.xlu0 %v1381, 104
        %v1386 = vpop.permute.xlu0 %1385
        %1387 = vrot.lane.b32.xlu0 %v1382, 104
        %v1388 = vpop.permute.xlu0 %1387
        %v1391 = vadd.f32 %v1377, %v1386
        %v1392 = vadd.f32 %v1378, %v1388
        %s1393 = sld [smem:[#allocation2 + $0x47]]
        %v1394 = vstv %s1393
        %v1395 = vmul.f32 %v297, %v1394
        %v1396 = vmul.f32 %v302, %v1394
        %v1397 = vadd.f32 %v1391, %v1395
        %v1398 = vadd.f32 %v1392, %v1396
        %s1399 = sld [smem:[#allocation2 + $0x4f]]
        %v1400 = vstv %s1399
        %v1401 = vmul.f32 %v297, %v1400
        %v1402 = vmul.f32 %v302, %v1400
        %1405 = vrot.lane.b32.xlu0 %v1401, 120
        %v1406 = vpop.permute.xlu0 %1405
        %1407 = vrot.lane.b32.xlu0 %v1402, 120
        %v1408 = vpop.permute.xlu0 %1407
        %v1411 = vadd.f32 %v1397, %v1406
        %v1412 = vadd.f32 %v1398, %v1408
        %s1413 = sld [smem:[#allocation2 + $0x57]]
        %v1414 = vstv %s1413
        %v1415 = vmul.f32 %v297, %v1414
        %v1416 = vmul.f32 %v302, %v1414
        %1419 = vrot.lane.b32.xlu0 %v1415, 112
        %v1420 = vpop.permute.xlu0 %1419
        %1421 = vrot.lane.b32.xlu0 %v1416, 112
        %v1422 = vpop.permute.xlu0 %1421
        %v1425 = vadd.f32 %v1411, %v1420
        %v1426 = vadd.f32 %v1412, %v1422
        %s1427 = sld [smem:[#allocation2 + $0x5f]]
        %v1428 = vstv %s1427
        %v1429 = vmul.f32 %v297, %v1428
        %v1430 = vmul.f32 %v302, %v1428
        %1433 = vrot.lane.b32.xlu0 %v1429, 104
        %v1434 = vpop.permute.xlu0 %1433
        %1435 = vrot.lane.b32.xlu0 %v1430, 104
        %v1436 = vpop.permute.xlu0 %1435
        %v1439 = vadd.f32 %v1425, %v1434
        %v1440 = vadd.f32 %v1426, %v1436
        %1443 = vrot.lane.b32.xlu0 %v587, 8
        %v1444 = vpop.permute.xlu0 %1443
        %1445 = vrot.lane.b32.xlu0 %v588, 8
        %v1446 = vpop.permute.xlu0 %1445
        %1451 = vrot.lane.b32.xlu0 %v729, 16
        %v1452 = vpop.permute.xlu0 %1451
        %1453 = vrot.lane.b32.xlu0 %v730, 16
        %v1454 = vpop.permute.xlu0 %1453
        %1459 = vrot.lane.b32.xlu0 %v871, 24
        %v1460 = vpop.permute.xlu0 %1459
        %1461 = vrot.lane.b32.xlu0 %v872, 24
        %v1462 = vpop.permute.xlu0 %1461
        %1467 = vrot.lane.b32.xlu0 %v1013, 32
        %v1468 = vpop.permute.xlu0 %1467
        %1469 = vrot.lane.b32.xlu0 %v1014, 32
        %v1470 = vpop.permute.xlu0 %1469
        %1475 = vrot.lane.b32.xlu0 %v1155, 40
        %v1476 = vpop.permute.xlu0 %1475
        %1477 = vrot.lane.b32.xlu0 %v1156, 40
        %v1478 = vpop.permute.xlu0 %1477
        %1483 = vrot.lane.b32.xlu0 %v1297, 48
        %v1484 = vpop.permute.xlu0 %1483
        %1485 = vrot.lane.b32.xlu0 %v1298, 48
        %v1486 = vpop.permute.xlu0 %1485
        %1491 = vrot.lane.b32.xlu0 %v1439, 56
        %v1492 = vpop.permute.xlu0 %1491
        %1493 = vrot.lane.b32.xlu0 %v1440, 56
        %v1494 = vpop.permute.xlu0 %1493
        %vm1497 = vcmask 64512
        %v1498 = vsel %vm1497, %v445, %v1444
        %v1499 = vsel %vm1497, %v446, %v1446
        %v1500 = vsel %vm191, %v1498, %v1452
        %v1501 = vsel %vm191, %v1499, %v1454
        %vm1502 = vcmask 195584
        %v1503 = vsel %vm1502, %v1500, %v1460
        %v1504 = vsel %vm1502, %v1501, %v1462
        %vm1505 = vcmask 261120
        %v1506 = vsel %vm1505, %v1503, %v1468
        %v1507 = vsel %vm1505, %v1504, %v1470
        %vm1508 = vcmask 326656
        %v1509 = vsel %vm1508, %v1506, %v1476
        %v1510 = vsel %vm1508, %v1507, %v1478
        %vm1511 = vcmask 392192
        %v1512 = vsel %vm1511, %v1509, %v1484
        %v1513 = vsel %vm1511, %v1510, %v1486
        %vm1514 = vcmask 457728
        %v1515 = vsel %vm1514, %v1512, %v1492
        %v1516 = vsel %vm1514, %v1513, %v1494
        %v1517 = vmax.f32 %v1515, 0.0
        %v1518 = vmax.f32 %v1516, 0.0
        %vm1519 = vcmask 523264
        %1520 = vst.msk [vmem:[%s177] sm:$0xff] %vm1519, %v1517
        %1521 = vst.msk [vmem:[%s177 + $0x8] sm:$0xff] %vm1519, %v1518
        %s1522 = sand.u32 %s94, 1
        %s1523 = scalar_lea.sflag [#allocation3], %s1522
        %s1524 = sand.u32 %s94, 1
        %s1525 = smul.addr %s1524, 16
        %s1526 = scalar_lea.vmem [#allocation5], %s1525
        // Predicated region
        $region37: #{tpu_custom_call.1} parent=31 // pred_check
          %p1527 = pneg %p104
        $region38: #{tpu_custom_call.1} parent=31 // pred_check_branch
          %1529 = sbr.rel (%p1527) target = $region40
        $region39: #{tpu_custom_call.1} parent=31 // pred_region
          %s1531 = ssub.s32 256, 256
          %1532 = vsyncadd %s1523, %s1531
          %s1533 = smul.addr %s18, 2
          %s1534 = smul.addr %s1533, 128
          %s1535 = scalar_lea.hbm %s3, %s1534
          %s1536 = sshll.u32 %s1526, 4
          %s1537 = int_to_ptr.vmem [resolvable:$true] %s1536
          %1542 = dma.vmem_to_hbm [thread:$0]  %s1537, 256, %s1535, %s1523, 128, 128, 8
        $region40: #{tpu_custom_call.1} parent=31 // pred_fallthru
          _
      $region32: #{tpu_custom_call.1} parent=5 // pred_fallthru
        _
      %p1543 = scmp.le.s32.totalorder 2, %s13
      // Predicated region
      $region41: #{tpu_custom_call.1} parent=5 // pred_check
        %p1544 = pneg %p1543
      $region42: #{tpu_custom_call.1} parent=5 // pred_check_branch
        %1546 = sbr.rel (%p1544) target = $region44
      $region43: #{tpu_custom_call.1} parent=5 // pred_region
        %s1547 = ssub.s32 %s13, 2
        // Predicated region
        $region45: #{tpu_custom_call.1} parent=43 // pred_check
          %p1548 = pneg %p110
        $region46: #{tpu_custom_call.1} parent=43 // pred_check_branch
          %1550 = sbr.rel (%p1548) target = $region48
        $region47: #{tpu_custom_call.1} parent=43 // pred_region
          %s1551 = sand.u32 %s95, 1
          %s1552 = scalar_lea.sflag [#allocation3], %s1551
          %s1553 = sand.u32 %s95, 1
          %s1554 = smul.addr %s1553, 16
          %s1555 = scalar_lea.vmem [#allocation5], %s1554
          %1556 = dma.done %s1552, 256
        $region48: #{tpu_custom_call.1} parent=43 // pred_fallthru
          _
      $region44: #{tpu_custom_call.1} parent=5 // pred_fallthru
        _
    $region6: #{tpu_custom_call.1} parent=1 // loop_footer
      %s17 = sadd.s32 1, %s13
    $region7: #{tpu_custom_call.1} parent=1 // loop_footer_branch
      %12 = sbr.rel target = $region3
    $region8: #{tpu_custom_call.1} parent=1 // loop_exit
      _
    %1557 = vsyncpa [#allocation3], 1
    %s1558 = scalar_lea.sflag [#allocation3], 1
    %1559 = vsyncpa %s1558, 1
    %1560 = vsyncpa [#allocation4], 1
    %s1561 = scalar_lea.sflag [#allocation4], 1
    %1562 = vsyncpa %s1561, 1

</llo_original>
